<compile_context>
chip_gen: v5e
topology: v5e:2x2
jax: 0.10.0
libtpu: 0.0.40
codegen_flags: <defaults>
</compile_context>

<pallas_src>
import math

import jax
import jax.numpy as jnp
from jax.experimental import pallas as pl
from jax.experimental.pallas import tpu as pltpu

# ----------------------- small BERT-like config -----------------------------
B = 2          # batch
S = 8          # max_seq_len
H = 32         # hidden_size
NH = 2         # num attention heads
DH = H // NH   # head dim
I_FF = 64      # intermediate (FFN) size
L = 2          # num encoder layers
VOCAB = 100
TYPE_VOCAB = 2
MAX_POS = 16
LN_EPS = 1e-12
MASK_NEG = -10000.0   # HF BERT extended-attention-mask constant
LANES = 128           # padded lane width for weights / bias slabs / output
assert 3 * H <= LANES and I_FF <= LANES and 2 * H <= LANES


# ----------------------------- in-kernel helpers ------------------------------
def _layernorm(x, gamma, beta):
    mu = jnp.mean(x, axis=-1, keepdims=True)
    var = jnp.mean(jnp.square(x - mu), axis=-1, keepdims=True)
    return (x - mu) * jax.lax.rsqrt(var + LN_EPS) * gamma + beta


def _gelu(x):
    # TODO(synk): HF BERT uses the exact erf GELU; tanh approximation is used
    # here (erf lowering is not guaranteed in Mosaic). Deviation ~1e-3.
    return 0.5 * x * (1.0 + jnp.tanh(0.7978845608028654 * (x + 0.044715 * x * x * x)))


# ------------------------------ fused kernel ----------------------------------
# Packed per-layer vector slab rows (each zero-padded to LANES):
#   0: bqkv (3H, Q-part pre-scaled)   1: b1 (I_FF)   2: bo
#   3: ln1_gamma   4: ln1_beta   5: b2   6: ln2_gamma   7: ln2_beta
# Global slab rows: 0: emb_ln_gamma   1: emb_ln_beta   2: pooler_bias
def fused_bert_kernel(emb_ref, mask_ref, gvec_ref, wp_ref,
                      wqkv_ref, wo_ref, w1_ref, w2_ref, vec_ref, out_ref):
    # ---- embedding layernorm (hidden state stays register/VMEM resident) ----
    x = _layernorm(emb_ref[...], gvec_ref[0:1, :], gvec_ref[1:2, :])   # (B*S, H)
    mask3 = mask_ref[...]                                              # (B, 1, S)

    # ---- static in-kernel layer loop; all weights already VMEM resident ----
    for li in range(L):
        vec = vec_ref[li]                                              # (8, LANES)

        # fused QKV projection, N padded to 128 lanes (scale folded into Q)
        qkv = jnp.dot(x, wqkv_ref[li],
                      preferred_element_type=jnp.float32) + vec[0:1, :]
        q = qkv[:, 0 * H:1 * H].reshape(B, S, H)
        k = qkv[:, 1 * H:2 * H].reshape(B, S, H)
        v = qkv[:, 2 * H:3 * H].reshape(B, S, H)

        # multi-head attention; per-head contexts kept register-resident
        ctx_heads = []
        for h in range(NH):                                            # tiny static
            sl = slice(h * DH, (h + 1) * DH)
            s = jnp.einsum('bqd,bkd->bqk', q[:, :, sl], k[:, :, sl],
                           preferred_element_type=jnp.float32) + mask3
            s = s - jnp.max(s, axis=-1, keepdims=True)
            p = jnp.exp(s)
            p = p * pl.reciprocal(jnp.sum(p, axis=-1, keepdims=True), approx=True)
            ctx_heads.append(jnp.einsum('bqk,bkd->bqd', p, v[:, :, sl],
                                        preferred_element_type=jnp.float32))
        ctx = jnp.concatenate(ctx_heads, axis=-1).reshape(B * S, H)

        # attention output projection + residual + LN1
        attn = jnp.dot(ctx, wo_ref[li],
                       preferred_element_type=jnp.float32) + vec[2:3, :H]
        h1 = _layernorm(attn + x, vec[3:4, :H], vec[4:5, :H])

        # FFN (intermediate lanes padded to 128) + residual + LN2
        f = jnp.dot(h1, w1_ref[li],
                    preferred_element_type=jnp.float32) + vec[1:2, :]
        f = _gelu(f)
        f = jnp.dot(f, w2_ref[li],
                    preferred_element_type=jnp.float32) + vec[5:6, :H]
        x = _layernorm(f + h1, vec[6:7, :H], vec[7:8, :H])

    # ---- pooler over all rows (CLS rows are selected lane-dense in wrapper) ----
    pooled_all = jnp.tanh(jnp.dot(x, wp_ref[...],
                                  preferred_element_type=jnp.float32)
                          + gvec_ref[2:3, :])

    # ---- single lane-dense (B*S, 128) store: [slot | pooled | zero pad] ----
    pad = jnp.zeros((B * S, LANES - 2 * H), jnp.float32)
    out_ref[...] = jnp.concatenate([x, pooled_all, pad], axis=1)


# ------------------------- parameter construction ----------------------------
def init_params(key):
    def nrm(k, shape, std=0.02):
        return std * jax.random.normal(k, shape, dtype=jnp.float32)

    keys = jax.random.split(key, 4 + 6 * L)
    scale = 1.0 / math.sqrt(DH)

    p = {
        "word_emb": nrm(keys[0], (VOCAB, H)),
        "pos_emb": nrm(keys[1], (MAX_POS, H)),
        "type_emb": nrm(keys[2], (TYPE_VOCAB, H)),
        # globals slab: row 0 emb_ln_gamma, row 1 emb_ln_beta, row 2 pooler_bias
        "gvec": jnp.stack([jnp.ones((H,), jnp.float32),
                           jnp.zeros((H,), jnp.float32),
                           jnp.zeros((H,), jnp.float32)], axis=0),
        "pooler_w": nrm(keys[3], (H, H)),
    }

    def padv(v):
        return jnp.pad(v, (0, LANES - v.shape[0]))

    wqkv_l, wo_l, w1_l, w2_l, vecs_l = [], [], [], [], []
    for li in range(L):
        k = keys[4 + 6 * li: 4 + 6 * (li + 1)]
        # fold the 1/sqrt(dh) attention scale into the Q projection (and bias)
        wq = nrm(k[0], (H, H)) * scale
        wk = nrm(k[1], (H, H))
        wv = nrm(k[2], (H, H))
        bq = jnp.zeros((H,), jnp.float32) * scale   # scale applied for real ckpts too
        bk = jnp.zeros((H,), jnp.float32)
        bv = jnp.zeros((H,), jnp.float32)

        wqkv = jnp.concatenate([wq, wk, wv], axis=1)                    # (H, 3H)
        wqkv_l.append(jnp.pad(wqkv, ((0, 0), (0, LANES - 3 * H))))      # (H, 128)
        wo_l.append(nrm(k[3], (H, H)))                                  # (H, H)
        w1_l.append(jnp.pad(nrm(k[4], (H, I_FF)),
                            ((0, 0), (0, LANES - I_FF))))               # (H, 128)
        w2_l.append(jnp.pad(nrm(k[5], (I_FF, H)),
                            ((0, LANES - I_FF), (0, 0))))               # (128, H)
        vecs_l.append(jnp.stack([
            padv(jnp.concatenate([bq, bk, bv])),                        # 0: bqkv
            padv(jnp.zeros((I_FF,), jnp.float32)),                      # 1: b1
            padv(jnp.zeros((H,), jnp.float32)),                         # 2: bo
            padv(jnp.ones((H,), jnp.float32)),                          # 3: ln1_gamma
            padv(jnp.zeros((H,), jnp.float32)),                         # 4: ln1_beta
            padv(jnp.zeros((H,), jnp.float32)),                         # 5: b2
            padv(jnp.ones((H,), jnp.float32)),                          # 6: ln2_gamma
            padv(jnp.zeros((H,), jnp.float32)),                         # 7: ln2_beta
        ], axis=0))                                                     # (8, 128)

    p["wqkv"] = jnp.stack(wqkv_l)                                       # (L, H, 128)
    p["wo"] = jnp.stack(wo_l)                                           # (L, H, H)
    p["w1"] = jnp.stack(w1_l)                                           # (L, H, 128)
    p["w2"] = jnp.stack(w2_l)                                           # (L, 128, H)
    p["vecs"] = jnp.stack(vecs_l)                                       # (L, 8, 128)
    return p


# ------------------------------- forward --------------------------------------
def bert_encoder_forward(params, input_ids, attention_mask, token_type_ids):
    # Embedding lookups stay in JAX glue (gathers); everything else is fused.
    emb = (jnp.take(params["word_emb"], input_ids, axis=0)
           + params["pos_emb"][:S][None, :, :]
           + jnp.take(params["type_emb"], token_type_ids, axis=0))
    emb2 = emb.reshape(B * S, H).astype(jnp.float32)

    # HF-style extended attention mask: (1 - mask) * -10000, added over keys
    mask3 = ((1.0 - attention_mask.astype(jnp.float32)) * MASK_NEG)[:, None, :]

    vmem = pl.BlockSpec(memory_space=pltpu.MemorySpace.VMEM)
    out = pl.pallas_call(
        fused_bert_kernel,
        out_shape=jax.ShapeDtypeStruct((B * S, LANES), jnp.float32),
        in_specs=[vmem] * 9,
        out_specs=vmem,
    )(emb2, mask3, params["gvec"], params["pooler_w"],
      params["wqkv"], params["wo"], params["w1"], params["w2"], params["vecs"])

    slot_features = out[:, :H].reshape(B, S, H)                  # bert_outputs[0]
    pooled = out[:, H:2 * H].reshape(B, S, H)[:, 0, :]           # CLS rows (wrapper)
    # uni_intent=True: pooled.unsqueeze(1).repeat(1, S, 1)
    intent_features = jnp.broadcast_to(pooled[:, None, :], (B, S, H))
    return intent_features, slot_features


# --------------------------------- main ----------------------------------------
if __name__ == "__main__":
    key = jax.random.PRNGKey(0)
    k_param, k_ids, k_type = jax.random.split(key, 3)

    params = init_params(k_param)

    input_ids = jax.random.randint(k_ids, (B, S), 0, VOCAB, dtype=jnp.int32)
    # second example has 2 padding positions at the end
    attention_mask = jnp.array([[1] * S, [1] * (S - 2) + [0, 0]], dtype=jnp.int32)
    token_type_ids = jax.random.randint(k_type, (B, S), 0, TYPE_VOCAB, dtype=jnp.int32)

    fwd = jax.jit(bert_encoder_forward)
    intent_features, slot_features = fwd(params, input_ids, attention_mask,
                                         token_type_ids)
    jax.block_until_ready((intent_features, slot_features))

    assert intent_features.shape == (B, S, H)
    assert slot_features.shape == (B, S, H)
    assert bool(jnp.all(jnp.isfinite(intent_features)))
    assert bool(jnp.all(jnp.isfinite(slot_features)))
    print("KERNEL_OK")
</pallas_src>

<mosaic_0001>
module attributes {stable_mosaic.version = 11 : i64} {
  func.func @fused_bert_kernel(%arg0: memref<16x32xf32, #tpu.memory_space<vmem>>, %arg1: memref<2x1x8xf32, #tpu.memory_space<vmem>>, %arg2: memref<3x32xf32, #tpu.memory_space<vmem>>, %arg3: memref<32x32xf32, #tpu.memory_space<vmem>>, %arg4: memref<2x32x128xf32, #tpu.memory_space<vmem>>, %arg5: memref<2x32x32xf32, #tpu.memory_space<vmem>>, %arg6: memref<2x32x128xf32, #tpu.memory_space<vmem>>, %arg7: memref<2x128x32xf32, #tpu.memory_space<vmem>>, %arg8: memref<2x8x128xf32, #tpu.memory_space<vmem>>, %arg9: memref<16x128xf32, #tpu.memory_space<vmem>>) attributes {dimension_semantics = [], scalar_prefetch = 0 : i64, scratch_operands = 0 : i64, tpu.core_type = #tpu.core_type<tc>} {
    %c0 = arith.constant 0 : index
    %c0_0 = arith.constant 0 : index
    %0 = vector.load %arg0[%c0, %c0_0] : memref<16x32xf32, #tpu.memory_space<vmem>>, vector<16x32xf32>
    %c0_1 = arith.constant 0 : index
    %c0_2 = arith.constant 0 : index
    %1 = vector.load %arg2[%c0_1, %c0_2] : memref<3x32xf32, #tpu.memory_space<vmem>>, vector<1x32xf32>
    %c1 = arith.constant 1 : index
    %c0_3 = arith.constant 0 : index
    %2 = vector.load %arg2[%c1, %c0_3] : memref<3x32xf32, #tpu.memory_space<vmem>>, vector<1x32xf32>
    %cst = arith.constant dense<0.000000e+00> : vector<16xf32>
    %3 = vector.multi_reduction <add>, %0, %cst [1] : vector<16x32xf32> to vector<16xf32>
    %4 = vector.shape_cast %3 : vector<16xf32> to vector<16x1xf32>
    %cst_4 = arith.constant 3.200000e+01 : f32
    %5 = vector.broadcast %cst_4 : f32 to vector<16x1xf32>
    %6 = arith.divf %4, %5 : vector<16x1xf32>
    %7 = vector.broadcast %6 : vector<16x1xf32> to vector<16x32xf32>
    %8 = arith.subf %0, %7 : vector<16x32xf32>
    %9 = arith.mulf %8, %8 : vector<16x32xf32>
    %cst_5 = arith.constant dense<0.000000e+00> : vector<16xf32>
    %10 = vector.multi_reduction <add>, %9, %cst_5 [1] : vector<16x32xf32> to vector<16xf32>
    %11 = vector.shape_cast %10 : vector<16xf32> to vector<16x1xf32>
    %cst_6 = arith.constant 3.200000e+01 : f32
    %12 = vector.broadcast %cst_6 : f32 to vector<16x1xf32>
    %13 = arith.divf %11, %12 : vector<16x1xf32>
    %14 = vector.broadcast %6 : vector<16x1xf32> to vector<16x32xf32>
    %15 = arith.subf %0, %14 : vector<16x32xf32>
    %cst_7 = arith.constant 9.99999996E-13 : f32
    %16 = vector.broadcast %cst_7 : f32 to vector<16x1xf32>
    %17 = arith.addf %13, %16 : vector<16x1xf32>
    %18 = math.rsqrt %17 : vector<16x1xf32>
    %19 = vector.broadcast %18 : vector<16x1xf32> to vector<16x32xf32>
    %20 = arith.mulf %15, %19 : vector<16x32xf32>
    %21 = vector.broadcast %1 : vector<1x32xf32> to vector<16x32xf32>
    %22 = arith.mulf %20, %21 : vector<16x32xf32>
    %23 = vector.broadcast %2 : vector<1x32xf32> to vector<16x32xf32>
    %24 = arith.addf %22, %23 : vector<16x32xf32>
    %c0_8 = arith.constant 0 : index
    %c0_9 = arith.constant 0 : index
    %c0_10 = arith.constant 0 : index
    %25 = vector.load %arg1[%c0_8, %c0_9, %c0_10] : memref<2x1x8xf32, #tpu.memory_space<vmem>>, vector<2x1x8xf32>
    %c0_11 = arith.constant 0 : index
    %c0_12 = arith.constant 0 : index
    %c0_13 = arith.constant 0 : index
    %26 = vector.load %arg8[%c0_11, %c0_12, %c0_13] : memref<2x8x128xf32, #tpu.memory_space<vmem>>, vector<1x8x128xf32>
    %27 = vector.shape_cast %26 : vector<1x8x128xf32> to vector<8x128xf32>
    %c0_14 = arith.constant 0 : index
    %c0_15 = arith.constant 0 : index
    %c0_16 = arith.constant 0 : index
    %28 = vector.load %arg4[%c0_14, %c0_15, %c0_16] : memref<2x32x128xf32, #tpu.memory_space<vmem>>, vector<1x32x128xf32>
    %29 = vector.shape_cast %28 : vector<1x32x128xf32> to vector<32x128xf32>
    %cst_17 = arith.constant dense<0.000000e+00> : vector<16x128xf32>
    %30 = tpu.matmul %24, %29, %cst_17 {dimension_numbers = #tpu.dot_dimension_numbers<[1], [0], [0], [1], [0, 0, 1, 1], [], []>} : vector<16x32xf32>, vector<32x128xf32>, vector<16x128xf32> -> vector<16x128xf32>
    %31 = vector.extract_strided_slice %27 {offsets = [0, 0], sizes = [1, 128], strides = [1, 1]} : vector<8x128xf32> to vector<1x128xf32>
    %32 = vector.broadcast %31 : vector<1x128xf32> to vector<16x128xf32>
    %33 = arith.addf %30, %32 : vector<16x128xf32>
    %34 = vector.extract_strided_slice %33 {offsets = [0, 0], sizes = [16, 32], strides = [1, 1]} : vector<16x128xf32> to vector<16x32xf32>
    %35 = vector.shape_cast %34 : vector<16x32xf32> to vector<2x8x32xf32>
    %36 = vector.extract_strided_slice %33 {offsets = [0, 32], sizes = [16, 32], strides = [1, 1]} : vector<16x128xf32> to vector<16x32xf32>
    %37 = vector.shape_cast %36 : vector<16x32xf32> to vector<2x8x32xf32>
    %38 = vector.extract_strided_slice %33 {offsets = [0, 64], sizes = [16, 32], strides = [1, 1]} : vector<16x128xf32> to vector<16x32xf32>
    %39 = vector.shape_cast %38 : vector<16x32xf32> to vector<2x8x32xf32>
    %40 = vector.extract_strided_slice %35 {offsets = [0, 0, 0], sizes = [2, 8, 16], strides = [1, 1, 1]} : vector<2x8x32xf32> to vector<2x8x16xf32>
    %41 = vector.extract_strided_slice %37 {offsets = [0, 0, 0], sizes = [2, 8, 16], strides = [1, 1, 1]} : vector<2x8x32xf32> to vector<2x8x16xf32>
    "tpu.trace_start"() <{level = 10 : i32, message = "bqd,bkd->bqk"}> : () -> ()
    %cst_18 = arith.constant dense<0.000000e+00> : vector<2x8x8xf32>
    %42 = tpu.matmul %40, %41, %cst_18 {dimension_numbers = #tpu.dot_dimension_numbers<[2], [2], [1], [1], [0, 0, 0, 1, 1, 1], [0], [0]>} : vector<2x8x16xf32>, vector<2x8x16xf32>, vector<2x8x8xf32> -> vector<2x8x8xf32>
    "tpu.trace_stop"() : () -> ()
    %43 = vector.broadcast %25 : vector<2x1x8xf32> to vector<2x8x8xf32>
    %44 = arith.addf %42, %43 : vector<2x8x8xf32>
    %cst_19 = arith.constant dense<0xFF800000> : vector<2x8xf32>
    %45 = vector.multi_reduction <maximumf>, %44, %cst_19 [2] : vector<2x8x8xf32> to vector<2x8xf32>
    %46 = vector.shape_cast %45 : vector<2x8xf32> to vector<2x8x1xf32>
    %47 = vector.broadcast %46 : vector<2x8x1xf32> to vector<2x8x8xf32>
    %48 = arith.subf %44, %47 : vector<2x8x8xf32>
    %49 = math.exp %48 : vector<2x8x8xf32>
    %cst_20 = arith.constant dense<0.000000e+00> : vector<2x8xf32>
    %50 = vector.multi_reduction <add>, %49, %cst_20 [2] : vector<2x8x8xf32> to vector<2x8xf32>
    %51 = vector.shape_cast %50 : vector<2x8xf32> to vector<2x8x1xf32>
    %52 = tpu.reciprocal %51 {approx = true} : vector<2x8x1xf32> -> vector<2x8x1xf32>
    %53 = vector.broadcast %52 : vector<2x8x1xf32> to vector<2x8x8xf32>
    %54 = arith.mulf %49, %53 : vector<2x8x8xf32>
    %55 = vector.extract_strided_slice %39 {offsets = [0, 0, 0], sizes = [2, 8, 16], strides = [1, 1, 1]} : vector<2x8x32xf32> to vector<2x8x16xf32>
    "tpu.trace_start"() <{level = 10 : i32, message = "bqk,bkd->bqd"}> : () -> ()
    %cst_21 = arith.constant dense<0.000000e+00> : vector<2x8x16xf32>
    %56 = tpu.matmul %54, %55, %cst_21 {dimension_numbers = #tpu.dot_dimension_numbers<[2], [1], [1], [2], [0, 0, 0, 1, 1, 2], [0], [0]>} : vector<2x8x8xf32>, vector<2x8x16xf32>, vector<2x8x16xf32> -> vector<2x8x16xf32>
    "tpu.trace_stop"() : () -> ()
    %57 = vector.extract_strided_slice %35 {offsets = [0, 0, 16], sizes = [2, 8, 16], strides = [1, 1, 1]} : vector<2x8x32xf32> to vector<2x8x16xf32>
    %58 = vector.extract_strided_slice %37 {offsets = [0, 0, 16], sizes = [2, 8, 16], strides = [1, 1, 1]} : vector<2x8x32xf32> to vector<2x8x16xf32>
    "tpu.trace_start"() <{level = 10 : i32, message = "bqd,bkd->bqk"}> : () -> ()
    %cst_22 = arith.constant dense<0.000000e+00> : vector<2x8x8xf32>
    %59 = tpu.matmul %57, %58, %cst_22 {dimension_numbers = #tpu.dot_dimension_numbers<[2], [2], [1], [1], [0, 0, 0, 1, 1, 1], [0], [0]>} : vector<2x8x16xf32>, vector<2x8x16xf32>, vector<2x8x8xf32> -> vector<2x8x8xf32>
    "tpu.trace_stop"() : () -> ()
    %60 = vector.broadcast %25 : vector<2x1x8xf32> to vector<2x8x8xf32>
    %61 = arith.addf %59, %60 : vector<2x8x8xf32>
    %cst_23 = arith.constant dense<0xFF800000> : vector<2x8xf32>
    %62 = vector.multi_reduction <maximumf>, %61, %cst_23 [2] : vector<2x8x8xf32> to vector<2x8xf32>
    %63 = vector.shape_cast %62 : vector<2x8xf32> to vector<2x8x1xf32>
    %64 = vector.broadcast %63 : vector<2x8x1xf32> to vector<2x8x8xf32>
    %65 = arith.subf %61, %64 : vector<2x8x8xf32>
    %66 = math.exp %65 : vector<2x8x8xf32>
    %cst_24 = arith.constant dense<0.000000e+00> : vector<2x8xf32>
    %67 = vector.multi_reduction <add>, %66, %cst_24 [2] : vector<2x8x8xf32> to vector<2x8xf32>
    %68 = vector.shape_cast %67 : vector<2x8xf32> to vector<2x8x1xf32>
    %69 = tpu.reciprocal %68 {approx = true} : vector<2x8x1xf32> -> vector<2x8x1xf32>
    %70 = vector.broadcast %69 : vector<2x8x1xf32> to vector<2x8x8xf32>
    %71 = arith.mulf %66, %70 : vector<2x8x8xf32>
    %72 = vector.extract_strided_slice %39 {offsets = [0, 0, 16], sizes = [2, 8, 16], strides = [1, 1, 1]} : vector<2x8x32xf32> to vector<2x8x16xf32>
    "tpu.trace_start"() <{level = 10 : i32, message = "bqk,bkd->bqd"}> : () -> ()
    %cst_25 = arith.constant dense<0.000000e+00> : vector<2x8x16xf32>
    %73 = tpu.matmul %71, %72, %cst_25 {dimension_numbers = #tpu.dot_dimension_numbers<[2], [1], [1], [2], [0, 0, 0, 1, 1, 2], [0], [0]>} : vector<2x8x8xf32>, vector<2x8x16xf32>, vector<2x8x16xf32> -> vector<2x8x16xf32>
    "tpu.trace_stop"() : () -> ()
    %74 = tpu.concatenate %56, %73 in 2 : vector<2x8x16xf32>, vector<2x8x16xf32> -> vector<2x8x32xf32>
    %75 = vector.shape_cast %74 : vector<2x8x32xf32> to vector<16x32xf32>
    %c0_26 = arith.constant 0 : index
    %c0_27 = arith.constant 0 : index
    %c0_28 = arith.constant 0 : index
    %76 = vector.load %arg5[%c0_26, %c0_27, %c0_28] : memref<2x32x32xf32, #tpu.memory_space<vmem>>, vector<1x32x32xf32>
    %77 = vector.shape_cast %76 : vector<1x32x32xf32> to vector<32x32xf32>
    %cst_29 = arith.constant dense<0.000000e+00> : vector<16x32xf32>
    %78 = tpu.matmul %75, %77, %cst_29 {dimension_numbers = #tpu.dot_dimension_numbers<[1], [0], [0], [1], [0, 0, 1, 1], [], []>} : vector<16x32xf32>, vector<32x32xf32>, vector<16x32xf32> -> vector<16x32xf32>
    %79 = vector.extract_strided_slice %27 {offsets = [2, 0], sizes = [1, 32], strides = [1, 1]} : vector<8x128xf32> to vector<1x32xf32>
    %80 = vector.broadcast %79 : vector<1x32xf32> to vector<16x32xf32>
    %81 = arith.addf %78, %80 : vector<16x32xf32>
    %82 = arith.addf %81, %24 : vector<16x32xf32>
    %83 = vector.extract_strided_slice %27 {offsets = [3, 0], sizes = [1, 32], strides = [1, 1]} : vector<8x128xf32> to vector<1x32xf32>
    %84 = vector.extract_strided_slice %27 {offsets = [4, 0], sizes = [1, 32], strides = [1, 1]} : vector<8x128xf32> to vector<1x32xf32>
    %cst_30 = arith.constant dense<0.000000e+00> : vector<16xf32>
    %85 = vector.multi_reduction <add>, %82, %cst_30 [1] : vector<16x32xf32> to vector<16xf32>
    %86 = vector.shape_cast %85 : vector<16xf32> to vector<16x1xf32>
    %cst_31 = arith.constant 3.200000e+01 : f32
    %87 = vector.broadcast %cst_31 : f32 to vector<16x1xf32>
    %88 = arith.divf %86, %87 : vector<16x1xf32>
    %89 = vector.broadcast %88 : vector<16x1xf32> to vector<16x32xf32>
    %90 = arith.subf %82, %89 : vector<16x32xf32>
    %91 = arith.mulf %90, %90 : vector<16x32xf32>
    %cst_32 = arith.constant dense<0.000000e+00> : vector<16xf32>
    %92 = vector.multi_reduction <add>, %91, %cst_32 [1] : vector<16x32xf32> to vector<16xf32>
    %93 = vector.shape_cast %92 : vector<16xf32> to vector<16x1xf32>
    %cst_33 = arith.constant 3.200000e+01 : f32
    %94 = vector.broadcast %cst_33 : f32 to vector<16x1xf32>
    %95 = arith.divf %93, %94 : vector<16x1xf32>
    %96 = vector.broadcast %88 : vector<16x1xf32> to vector<16x32xf32>
    %97 = arith.subf %82, %96 : vector<16x32xf32>
    %cst_34 = arith.constant 9.99999996E-13 : f32
    %98 = vector.broadcast %cst_34 : f32 to vector<16x1xf32>
    %99 = arith.addf %95, %98 : vector<16x1xf32>
    %100 = math.rsqrt %99 : vector<16x1xf32>
    %101 = vector.broadcast %100 : vector<16x1xf32> to vector<16x32xf32>
    %102 = arith.mulf %97, %101 : vector<16x32xf32>
    %103 = vector.broadcast %83 : vector<1x32xf32> to vector<16x32xf32>
    %104 = arith.mulf %102, %103 : vector<16x32xf32>
    %105 = vector.broadcast %84 : vector<1x32xf32> to vector<16x32xf32>
    %106 = arith.addf %104, %105 : vector<16x32xf32>
    %c0_35 = arith.constant 0 : index
    %c0_36 = arith.constant 0 : index
    %c0_37 = arith.constant 0 : index
    %107 = vector.load %arg6[%c0_35, %c0_36, %c0_37] : memref<2x32x128xf32, #tpu.memory_space<vmem>>, vector<1x32x128xf32>
    %108 = vector.shape_cast %107 : vector<1x32x128xf32> to vector<32x128xf32>
    %cst_38 = arith.constant dense<0.000000e+00> : vector<16x128xf32>
    %109 = tpu.matmul %106, %108, %cst_38 {dimension_numbers = #tpu.dot_dimension_numbers<[1], [0], [0], [1], [0, 0, 1, 1], [], []>} : vector<16x32xf32>, vector<32x128xf32>, vector<16x128xf32> -> vector<16x128xf32>
    %110 = vector.extract_strided_slice %27 {offsets = [1, 0], sizes = [1, 128], strides = [1, 1]} : vector<8x128xf32> to vector<1x128xf32>
    %111 = vector.broadcast %110 : vector<1x128xf32> to vector<16x128xf32>
    %112 = arith.addf %109, %111 : vector<16x128xf32>
    %cst_39 = arith.constant 5.000000e-01 : f32
    %113 = vector.broadcast %cst_39 : f32 to vector<16x128xf32>
    %114 = arith.mulf %113, %112 : vector<16x128xf32>
    %cst_40 = arith.constant 4.471500e-02 : f32
    %115 = vector.broadcast %cst_40 : f32 to vector<16x128xf32>
    %116 = arith.mulf %115, %112 : vector<16x128xf32>
    %117 = arith.mulf %116, %112 : vector<16x128xf32>
    %118 = arith.mulf %117, %112 : vector<16x128xf32>
    %119 = arith.addf %112, %118 : vector<16x128xf32>
    %cst_41 = arith.constant 0.797884583 : f32
    %120 = vector.broadcast %cst_41 : f32 to vector<16x128xf32>
    %121 = arith.mulf %120, %119 : vector<16x128xf32>
    %122 = math.tanh %121 : vector<16x128xf32>
    %cst_42 = arith.constant 1.000000e+00 : f32
    %123 = vector.broadcast %cst_42 : f32 to vector<16x128xf32>
    %124 = arith.addf %123, %122 : vector<16x128xf32>
    %125 = arith.mulf %114, %124 : vector<16x128xf32>
    %c0_43 = arith.constant 0 : index
    %c0_44 = arith.constant 0 : index
    %c0_45 = arith.constant 0 : index
    %126 = vector.load %arg7[%c0_43, %c0_44, %c0_45] : memref<2x128x32xf32, #tpu.memory_space<vmem>>, vector<1x128x32xf32>
    %127 = vector.shape_cast %126 : vector<1x128x32xf32> to vector<128x32xf32>
    %cst_46 = arith.constant dense<0.000000e+00> : vector<16x32xf32>
    %128 = tpu.matmul %125, %127, %cst_46 {dimension_numbers = #tpu.dot_dimension_numbers<[1], [0], [0], [1], [0, 0, 1, 1], [], []>} : vector<16x128xf32>, vector<128x32xf32>, vector<16x32xf32> -> vector<16x32xf32>
    %129 = vector.extract_strided_slice %27 {offsets = [5, 0], sizes = [1, 32], strides = [1, 1]} : vector<8x128xf32> to vector<1x32xf32>
    %130 = vector.broadcast %129 : vector<1x32xf32> to vector<16x32xf32>
    %131 = arith.addf %128, %130 : vector<16x32xf32>
    %132 = arith.addf %131, %106 : vector<16x32xf32>
    %133 = vector.extract_strided_slice %27 {offsets = [6, 0], sizes = [1, 32], strides = [1, 1]} : vector<8x128xf32> to vector<1x32xf32>
    %134 = vector.extract_strided_slice %27 {offsets = [7, 0], sizes = [1, 32], strides = [1, 1]} : vector<8x128xf32> to vector<1x32xf32>
    %cst_47 = arith.constant dense<0.000000e+00> : vector<16xf32>
    %135 = vector.multi_reduction <add>, %132, %cst_47 [1] : vector<16x32xf32> to vector<16xf32>
    %136 = vector.shape_cast %135 : vector<16xf32> to vector<16x1xf32>
    %cst_48 = arith.constant 3.200000e+01 : f32
    %137 = vector.broadcast %cst_48 : f32 to vector<16x1xf32>
    %138 = arith.divf %136, %137 : vector<16x1xf32>
    %139 = vector.broadcast %138 : vector<16x1xf32> to vector<16x32xf32>
    %140 = arith.subf %132, %139 : vector<16x32xf32>
    %141 = arith.mulf %140, %140 : vector<16x32xf32>
    %cst_49 = arith.constant dense<0.000000e+00> : vector<16xf32>
    %142 = vector.multi_reduction <add>, %141, %cst_49 [1] : vector<16x32xf32> to vector<16xf32>
    %143 = vector.shape_cast %142 : vector<16xf32> to vector<16x1xf32>
    %cst_50 = arith.constant 3.200000e+01 : f32
    %144 = vector.broadcast %cst_50 : f32 to vector<16x1xf32>
    %145 = arith.divf %143, %144 : vector<16x1xf32>
    %146 = vector.broadcast %138 : vector<16x1xf32> to vector<16x32xf32>
    %147 = arith.subf %132, %146 : vector<16x32xf32>
    %cst_51 = arith.constant 9.99999996E-13 : f32
    %148 = vector.broadcast %cst_51 : f32 to vector<16x1xf32>
    %149 = arith.addf %145, %148 : vector<16x1xf32>
    %150 = math.rsqrt %149 : vector<16x1xf32>
    %151 = vector.broadcast %150 : vector<16x1xf32> to vector<16x32xf32>
    %152 = arith.mulf %147, %151 : vector<16x32xf32>
    %153 = vector.broadcast %133 : vector<1x32xf32> to vector<16x32xf32>
    %154 = arith.mulf %152, %153 : vector<16x32xf32>
    %155 = vector.broadcast %134 : vector<1x32xf32> to vector<16x32xf32>
    %156 = arith.addf %154, %155 : vector<16x32xf32>
    %c1_52 = arith.constant 1 : index
    %c0_53 = arith.constant 0 : index
    %c0_54 = arith.constant 0 : index
    %157 = vector.load %arg8[%c1_52, %c0_53, %c0_54] : memref<2x8x128xf32, #tpu.memory_space<vmem>>, vector<1x8x128xf32>
    %158 = vector.shape_cast %157 : vector<1x8x128xf32> to vector<8x128xf32>
    %c1_55 = arith.constant 1 : index
    %c0_56 = arith.constant 0 : index
    %c0_57 = arith.constant 0 : index
    %159 = vector.load %arg4[%c1_55, %c0_56, %c0_57] : memref<2x32x128xf32, #tpu.memory_space<vmem>>, vector<1x32x128xf32>
    %160 = vector.shape_cast %159 : vector<1x32x128xf32> to vector<32x128xf32>
    %cst_58 = arith.constant dense<0.000000e+00> : vector<16x128xf32>
    %161 = tpu.matmul %156, %160, %cst_58 {dimension_numbers = #tpu.dot_dimension_numbers<[1], [0], [0], [1], [0, 0, 1, 1], [], []>} : vector<16x32xf32>, vector<32x128xf32>, vector<16x128xf32> -> vector<16x128xf32>
    %162 = vector.extract_strided_slice %158 {offsets = [0, 0], sizes = [1, 128], strides = [1, 1]} : vector<8x128xf32> to vector<1x128xf32>
    %163 = vector.broadcast %162 : vector<1x128xf32> to vector<16x128xf32>
    %164 = arith.addf %161, %163 : vector<16x128xf32>
    %165 = vector.extract_strided_slice %164 {offsets = [0, 0], sizes = [16, 32], strides = [1, 1]} : vector<16x128xf32> to vector<16x32xf32>
    %166 = vector.shape_cast %165 : vector<16x32xf32> to vector<2x8x32xf32>
    %167 = vector.extract_strided_slice %164 {offsets = [0, 32], sizes = [16, 32], strides = [1, 1]} : vector<16x128xf32> to vector<16x32xf32>
    %168 = vector.shape_cast %167 : vector<16x32xf32> to vector<2x8x32xf32>
    %169 = vector.extract_strided_slice %164 {offsets = [0, 64], sizes = [16, 32], strides = [1, 1]} : vector<16x128xf32> to vector<16x32xf32>
    %170 = vector.shape_cast %169 : vector<16x32xf32> to vector<2x8x32xf32>
    %171 = vector.extract_strided_slice %166 {offsets = [0, 0, 0], sizes = [2, 8, 16], strides = [1, 1, 1]} : vector<2x8x32xf32> to vector<2x8x16xf32>
    %172 = vector.extract_strided_slice %168 {offsets = [0, 0, 0], sizes = [2, 8, 16], strides = [1, 1, 1]} : vector<2x8x32xf32> to vector<2x8x16xf32>
    "tpu.trace_start"() <{level = 10 : i32, message = "bqd,bkd->bqk"}> : () -> ()
    %cst_59 = arith.constant dense<0.000000e+00> : vector<2x8x8xf32>
    %173 = tpu.matmul %171, %172, %cst_59 {dimension_numbers = #tpu.dot_dimension_numbers<[2], [2], [1], [1], [0, 0, 0, 1, 1, 1], [0], [0]>} : vector<2x8x16xf32>, vector<2x8x16xf32>, vector<2x8x8xf32> -> vector<2x8x8xf32>
    "tpu.trace_stop"() : () -> ()
    %174 = vector.broadcast %25 : vector<2x1x8xf32> to vector<2x8x8xf32>
    %175 = arith.addf %173, %174 : vector<2x8x8xf32>
    %cst_60 = arith.constant dense<0xFF800000> : vector<2x8xf32>
    %176 = vector.multi_reduction <maximumf>, %175, %cst_60 [2] : vector<2x8x8xf32> to vector<2x8xf32>
    %177 = vector.shape_cast %176 : vector<2x8xf32> to vector<2x8x1xf32>
    %178 = vector.broadcast %177 : vector<2x8x1xf32> to vector<2x8x8xf32>
    %179 = arith.subf %175, %178 : vector<2x8x8xf32>
    %180 = math.exp %179 : vector<2x8x8xf32>
    %cst_61 = arith.constant dense<0.000000e+00> : vector<2x8xf32>
    %181 = vector.multi_reduction <add>, %180, %cst_61 [2] : vector<2x8x8xf32> to vector<2x8xf32>
    %182 = vector.shape_cast %181 : vector<2x8xf32> to vector<2x8x1xf32>
    %183 = tpu.reciprocal %182 {approx = true} : vector<2x8x1xf32> -> vector<2x8x1xf32>
    %184 = vector.broadcast %183 : vector<2x8x1xf32> to vector<2x8x8xf32>
    %185 = arith.mulf %180, %184 : vector<2x8x8xf32>
    %186 = vector.extract_strided_slice %170 {offsets = [0, 0, 0], sizes = [2, 8, 16], strides = [1, 1, 1]} : vector<2x8x32xf32> to vector<2x8x16xf32>
    "tpu.trace_start"() <{level = 10 : i32, message = "bqk,bkd->bqd"}> : () -> ()
    %cst_62 = arith.constant dense<0.000000e+00> : vector<2x8x16xf32>
    %187 = tpu.matmul %185, %186, %cst_62 {dimension_numbers = #tpu.dot_dimension_numbers<[2], [1], [1], [2], [0, 0, 0, 1, 1, 2], [0], [0]>} : vector<2x8x8xf32>, vector<2x8x16xf32>, vector<2x8x16xf32> -> vector<2x8x16xf32>
    "tpu.trace_stop"() : () -> ()
    %188 = vector.extract_strided_slice %166 {offsets = [0, 0, 16], sizes = [2, 8, 16], strides = [1, 1, 1]} : vector<2x8x32xf32> to vector<2x8x16xf32>
    %189 = vector.extract_strided_slice %168 {offsets = [0, 0, 16], sizes = [2, 8, 16], strides = [1, 1, 1]} : vector<2x8x32xf32> to vector<2x8x16xf32>
    "tpu.trace_start"() <{level = 10 : i32, message = "bqd,bkd->bqk"}> : () -> ()
    %cst_63 = arith.constant dense<0.000000e+00> : vector<2x8x8xf32>
    %190 = tpu.matmul %188, %189, %cst_63 {dimension_numbers = #tpu.dot_dimension_numbers<[2], [2], [1], [1], [0, 0, 0, 1, 1, 1], [0], [0]>} : vector<2x8x16xf32>, vector<2x8x16xf32>, vector<2x8x8xf32> -> vector<2x8x8xf32>
    "tpu.trace_stop"() : () -> ()
    %191 = vector.broadcast %25 : vector<2x1x8xf32> to vector<2x8x8xf32>
    %192 = arith.addf %190, %191 : vector<2x8x8xf32>
    %cst_64 = arith.constant dense<0xFF800000> : vector<2x8xf32>
    %193 = vector.multi_reduction <maximumf>, %192, %cst_64 [2] : vector<2x8x8xf32> to vector<2x8xf32>
    %194 = vector.shape_cast %193 : vector<2x8xf32> to vector<2x8x1xf32>
    %195 = vector.broadcast %194 : vector<2x8x1xf32> to vector<2x8x8xf32>
    %196 = arith.subf %192, %195 : vector<2x8x8xf32>
    %197 = math.exp %196 : vector<2x8x8xf32>
    %cst_65 = arith.constant dense<0.000000e+00> : vector<2x8xf32>
    %198 = vector.multi_reduction <add>, %197, %cst_65 [2] : vector<2x8x8xf32> to vector<2x8xf32>
    %199 = vector.shape_cast %198 : vector<2x8xf32> to vector<2x8x1xf32>
    %200 = tpu.reciprocal %199 {approx = true} : vector<2x8x1xf32> -> vector<2x8x1xf32>
    %201 = vector.broadcast %200 : vector<2x8x1xf32> to vector<2x8x8xf32>
    %202 = arith.mulf %197, %201 : vector<2x8x8xf32>
    %203 = vector.extract_strided_slice %170 {offsets = [0, 0, 16], sizes = [2, 8, 16], strides = [1, 1, 1]} : vector<2x8x32xf32> to vector<2x8x16xf32>
    "tpu.trace_start"() <{level = 10 : i32, message = "bqk,bkd->bqd"}> : () -> ()
    %cst_66 = arith.constant dense<0.000000e+00> : vector<2x8x16xf32>
    %204 = tpu.matmul %202, %203, %cst_66 {dimension_numbers = #tpu.dot_dimension_numbers<[2], [1], [1], [2], [0, 0, 0, 1, 1, 2], [0], [0]>} : vector<2x8x8xf32>, vector<2x8x16xf32>, vector<2x8x16xf32> -> vector<2x8x16xf32>
    "tpu.trace_stop"() : () -> ()
    %205 = tpu.concatenate %187, %204 in 2 : vector<2x8x16xf32>, vector<2x8x16xf32> -> vector<2x8x32xf32>
    %206 = vector.shape_cast %205 : vector<2x8x32xf32> to vector<16x32xf32>
    %c1_67 = arith.constant 1 : index
    %c0_68 = arith.constant 0 : index
    %c0_69 = arith.constant 0 : index
    %207 = vector.load %arg5[%c1_67, %c0_68, %c0_69] : memref<2x32x32xf32, #tpu.memory_space<vmem>>, vector<1x32x32xf32>
    %208 = vector.shape_cast %207 : vector<1x32x32xf32> to vector<32x32xf32>
    %cst_70 = arith.constant dense<0.000000e+00> : vector<16x32xf32>
    %209 = tpu.matmul %206, %208, %cst_70 {dimension_numbers = #tpu.dot_dimension_numbers<[1], [0], [0], [1], [0, 0, 1, 1], [], []>} : vector<16x32xf32>, vector<32x32xf32>, vector<16x32xf32> -> vector<16x32xf32>
    %210 = vector.extract_strided_slice %158 {offsets = [2, 0], sizes = [1, 32], strides = [1, 1]} : vector<8x128xf32> to vector<1x32xf32>
    %211 = vector.broadcast %210 : vector<1x32xf32> to vector<16x32xf32>
    %212 = arith.addf %209, %211 : vector<16x32xf32>
    %213 = arith.addf %212, %156 : vector<16x32xf32>
    %214 = vector.extract_strided_slice %158 {offsets = [3, 0], sizes = [1, 32], strides = [1, 1]} : vector<8x128xf32> to vector<1x32xf32>
    %215 = vector.extract_strided_slice %158 {offsets = [4, 0], sizes = [1, 32], strides = [1, 1]} : vector<8x128xf32> to vector<1x32xf32>
    %cst_71 = arith.constant dense<0.000000e+00> : vector<16xf32>
    %216 = vector.multi_reduction <add>, %213, %cst_71 [1] : vector<16x32xf32> to vector<16xf32>
    %217 = vector.shape_cast %216 : vector<16xf32> to vector<16x1xf32>
    %cst_72 = arith.constant 3.200000e+01 : f32
    %218 = vector.broadcast %cst_72 : f32 to vector<16x1xf32>
    %219 = arith.divf %217, %218 : vector<16x1xf32>
    %220 = vector.broadcast %219 : vector<16x1xf32> to vector<16x32xf32>
    %221 = arith.subf %213, %220 : vector<16x32xf32>
    %222 = arith.mulf %221, %221 : vector<16x32xf32>
    %cst_73 = arith.constant dense<0.000000e+00> : vector<16xf32>
    %223 = vector.multi_reduction <add>, %222, %cst_73 [1] : vector<16x32xf32> to vector<16xf32>
    %224 = vector.shape_cast %223 : vector<16xf32> to vector<16x1xf32>
    %cst_74 = arith.constant 3.200000e+01 : f32
    %225 = vector.broadcast %cst_74 : f32 to vector<16x1xf32>
    %226 = arith.divf %224, %225 : vector<16x1xf32>
    %227 = vector.broadcast %219 : vector<16x1xf32> to vector<16x32xf32>
    %228 = arith.subf %213, %227 : vector<16x32xf32>
    %cst_75 = arith.constant 9.99999996E-13 : f32
    %229 = vector.broadcast %cst_75 : f32 to vector<16x1xf32>
    %230 = arith.addf %226, %229 : vector<16x1xf32>
    %231 = math.rsqrt %230 : vector<16x1xf32>
    %232 = vector.broadcast %231 : vector<16x1xf32> to vector<16x32xf32>
    %233 = arith.mulf %228, %232 : vector<16x32xf32>
    %234 = vector.broadcast %214 : vector<1x32xf32> to vector<16x32xf32>
    %235 = arith.mulf %233, %234 : vector<16x32xf32>
    %236 = vector.broadcast %215 : vector<1x32xf32> to vector<16x32xf32>
    %237 = arith.addf %235, %236 : vector<16x32xf32>
    %c1_76 = arith.constant 1 : index
    %c0_77 = arith.constant 0 : index
    %c0_78 = arith.constant 0 : index
    %238 = vector.load %arg6[%c1_76, %c0_77, %c0_78] : memref<2x32x128xf32, #tpu.memory_space<vmem>>, vector<1x32x128xf32>
    %239 = vector.shape_cast %238 : vector<1x32x128xf32> to vector<32x128xf32>
    %cst_79 = arith.constant dense<0.000000e+00> : vector<16x128xf32>
    %240 = tpu.matmul %237, %239, %cst_79 {dimension_numbers = #tpu.dot_dimension_numbers<[1], [0], [0], [1], [0, 0, 1, 1], [], []>} : vector<16x32xf32>, vector<32x128xf32>, vector<16x128xf32> -> vector<16x128xf32>
    %241 = vector.extract_strided_slice %158 {offsets = [1, 0], sizes = [1, 128], strides = [1, 1]} : vector<8x128xf32> to vector<1x128xf32>
    %242 = vector.broadcast %241 : vector<1x128xf32> to vector<16x128xf32>
    %243 = arith.addf %240, %242 : vector<16x128xf32>
    %cst_80 = arith.constant 5.000000e-01 : f32
    %244 = vector.broadcast %cst_80 : f32 to vector<16x128xf32>
    %245 = arith.mulf %244, %243 : vector<16x128xf32>
    %cst_81 = arith.constant 4.471500e-02 : f32
    %246 = vector.broadcast %cst_81 : f32 to vector<16x128xf32>
    %247 = arith.mulf %246, %243 : vector<16x128xf32>
    %248 = arith.mulf %247, %243 : vector<16x128xf32>
    %249 = arith.mulf %248, %243 : vector<16x128xf32>
    %250 = arith.addf %243, %249 : vector<16x128xf32>
    %cst_82 = arith.constant 0.797884583 : f32
    %251 = vector.broadcast %cst_82 : f32 to vector<16x128xf32>
    %252 = arith.mulf %251, %250 : vector<16x128xf32>
    %253 = math.tanh %252 : vector<16x128xf32>
    %cst_83 = arith.constant 1.000000e+00 : f32
    %254 = vector.broadcast %cst_83 : f32 to vector<16x128xf32>
    %255 = arith.addf %254, %253 : vector<16x128xf32>
    %256 = arith.mulf %245, %255 : vector<16x128xf32>
    %c1_84 = arith.constant 1 : index
    %c0_85 = arith.constant 0 : index
    %c0_86 = arith.constant 0 : index
    %257 = vector.load %arg7[%c1_84, %c0_85, %c0_86] : memref<2x128x32xf32, #tpu.memory_space<vmem>>, vector<1x128x32xf32>
    %258 = vector.shape_cast %257 : vector<1x128x32xf32> to vector<128x32xf32>
    %cst_87 = arith.constant dense<0.000000e+00> : vector<16x32xf32>
    %259 = tpu.matmul %256, %258, %cst_87 {dimension_numbers = #tpu.dot_dimension_numbers<[1], [0], [0], [1], [0, 0, 1, 1], [], []>} : vector<16x128xf32>, vector<128x32xf32>, vector<16x32xf32> -> vector<16x32xf32>
    %260 = vector.extract_strided_slice %158 {offsets = [5, 0], sizes = [1, 32], strides = [1, 1]} : vector<8x128xf32> to vector<1x32xf32>
    %261 = vector.broadcast %260 : vector<1x32xf32> to vector<16x32xf32>
    %262 = arith.addf %259, %261 : vector<16x32xf32>
    %263 = arith.addf %262, %237 : vector<16x32xf32>
    %264 = vector.extract_strided_slice %158 {offsets = [6, 0], sizes = [1, 32], strides = [1, 1]} : vector<8x128xf32> to vector<1x32xf32>
    %265 = vector.extract_strided_slice %158 {offsets = [7, 0], sizes = [1, 32], strides = [1, 1]} : vector<8x128xf32> to vector<1x32xf32>
    %cst_88 = arith.constant dense<0.000000e+00> : vector<16xf32>
    %266 = vector.multi_reduction <add>, %263, %cst_88 [1] : vector<16x32xf32> to vector<16xf32>
    %267 = vector.shape_cast %266 : vector<16xf32> to vector<16x1xf32>
    %cst_89 = arith.constant 3.200000e+01 : f32
    %268 = vector.broadcast %cst_89 : f32 to vector<16x1xf32>
    %269 = arith.divf %267, %268 : vector<16x1xf32>
    %270 = vector.broadcast %269 : vector<16x1xf32> to vector<16x32xf32>
    %271 = arith.subf %263, %270 : vector<16x32xf32>
    %272 = arith.mulf %271, %271 : vector<16x32xf32>
    %cst_90 = arith.constant dense<0.000000e+00> : vector<16xf32>
    %273 = vector.multi_reduction <add>, %272, %cst_90 [1] : vector<16x32xf32> to vector<16xf32>
    %274 = vector.shape_cast %273 : vector<16xf32> to vector<16x1xf32>
    %cst_91 = arith.constant 3.200000e+01 : f32
    %275 = vector.broadcast %cst_91 : f32 to vector<16x1xf32>
    %276 = arith.divf %274, %275 : vector<16x1xf32>
    %277 = vector.broadcast %269 : vector<16x1xf32> to vector<16x32xf32>
    %278 = arith.subf %263, %277 : vector<16x32xf32>
    %cst_92 = arith.constant 9.99999996E-13 : f32
    %279 = vector.broadcast %cst_92 : f32 to vector<16x1xf32>
    %280 = arith.addf %276, %279 : vector<16x1xf32>
    %281 = math.rsqrt %280 : vector<16x1xf32>
    %282 = vector.broadcast %281 : vector<16x1xf32> to vector<16x32xf32>
    %283 = arith.mulf %278, %282 : vector<16x32xf32>
    %284 = vector.broadcast %264 : vector<1x32xf32> to vector<16x32xf32>
    %285 = arith.mulf %283, %284 : vector<16x32xf32>
    %286 = vector.broadcast %265 : vector<1x32xf32> to vector<16x32xf32>
    %287 = arith.addf %285, %286 : vector<16x32xf32>
    %c0_93 = arith.constant 0 : index
    %c0_94 = arith.constant 0 : index
    %288 = vector.load %arg3[%c0_93, %c0_94] : memref<32x32xf32, #tpu.memory_space<vmem>>, vector<32x32xf32>
    %cst_95 = arith.constant dense<0.000000e+00> : vector<16x32xf32>
    %289 = tpu.matmul %287, %288, %cst_95 {dimension_numbers = #tpu.dot_dimension_numbers<[1], [0], [0], [1], [0, 0, 1, 1], [], []>} : vector<16x32xf32>, vector<32x32xf32>, vector<16x32xf32> -> vector<16x32xf32>
    %c2 = arith.constant 2 : index
    %c0_96 = arith.constant 0 : index
    %290 = vector.load %arg2[%c2, %c0_96] : memref<3x32xf32, #tpu.memory_space<vmem>>, vector<1x32xf32>
    %291 = vector.broadcast %290 : vector<1x32xf32> to vector<16x32xf32>
    %292 = arith.addf %289, %291 : vector<16x32xf32>
    %293 = math.tanh %292 : vector<16x32xf32>
    %cst_97 = arith.constant 0.000000e+00 : f32
    %294 = vector.broadcast %cst_97 : f32 to vector<16x64xf32>
    %295 = tpu.concatenate %287, %293, %294 in 1 : vector<16x32xf32>, vector<16x32xf32>, vector<16x64xf32> -> vector<16x128xf32>
    %c0_98 = arith.constant 0 : index
    %c0_99 = arith.constant 0 : index
    %296 = vector.load %arg9[%c0_98, %c0_99] : memref<16x128xf32, #tpu.memory_space<vmem>>, vector<16x128xf32>
    tpu.vector_store %arg9[%c0_98, %c0_99], %295 {strides = array<i32>} : memref<16x128xf32, #tpu.memory_space<vmem>>, vector<16x128xf32>,
    return
  }
}

</mosaic_0001>

<llo_original>
// kernel: bert_encoder_forward.1
$region0: #{bert_encoder_forward.1}
  #allocation0 [shape = 'u32[]', space=smem, size = 0x4, offset = 0x4, fixed_abs, tag = 'smem constant byte address 0x4 - core index']
  #allocation1 [shape = 'u32[72,128]{1,0:T(1,128)}', space=vmem, size = 0x9000, scoped, tag = 'internal scratch']
  %s0 = inlined_call_operand.vmem [shape: f32[16,32], index: 0, kind: input, shape index: {}]
  %s1 = inlined_call_operand.vmem [shape: f32[2,1,8], index: 1, kind: input, shape index: {}]
  %s2 = inlined_call_operand.vmem [shape: f32[3,32], index: 2, kind: input, shape index: {}]
  %s3 = inlined_call_operand.vmem [shape: f32[32,32], index: 3, kind: input, shape index: {}]
  %s4 = inlined_call_operand.vmem [shape: f32[2,32,128], index: 4, kind: input, shape index: {}]
  %s5 = inlined_call_operand.vmem [shape: f32[2,32,32], index: 5, kind: input, shape index: {}]
  %s6 = inlined_call_operand.vmem [shape: f32[2,32,128], index: 6, kind: input, shape index: {}]
  %s7 = inlined_call_operand.vmem [shape: f32[2,128,32], index: 7, kind: input, shape index: {}]
  %s8 = inlined_call_operand.vmem [shape: f32[2,8,128], index: 8, kind: input, shape index: {}]
  %s9 = inlined_call_operand.vmem [shape: f32[16,128], index: 9, kind: output, shape index: {}]
  %s10 = sld [smem:[#allocation0]]
  $region46: #{bert_encoder_forward.1} parent=0
    _
  %s12 = ssub.s32 1, %s10
  %s13 = scalar_select 0, %s12, %s10
  // Predicated region
  $region2: #{bert_encoder_forward.1} parent=0 // pred_check
    _
  $region3: #{bert_encoder_forward.1} parent=0 // pred_check_branch
    %15 = sbr.rel (0) target = $region5
  $region4: #{bert_encoder_forward.1} parent=0 // pred_region
    _
  $region5: #{bert_encoder_forward.1} parent=0 // pred_fallthru
    _
  // Predicated region
  $region6: #{bert_encoder_forward.1} parent=0 // pred_check
    _
  $region7: #{bert_encoder_forward.1} parent=0 // pred_check_branch
    %17 = sbr.rel (0) target = $region9
  $region8: #{bert_encoder_forward.1} parent=0 // pred_region
    _
  $region9: #{bert_encoder_forward.1} parent=0 // pred_fallthru
    _
  // Predicated region
  $region10: #{bert_encoder_forward.1} parent=0 // pred_check
    _
  $region11: #{bert_encoder_forward.1} parent=0 // pred_check_branch
    %19 = sbr.rel (0) target = $region13
  $region12: #{bert_encoder_forward.1} parent=0 // pred_region
    _
  $region13: #{bert_encoder_forward.1} parent=0 // pred_fallthru
    _
  // Predicated region
  $region14: #{bert_encoder_forward.1} parent=0 // pred_check
    _
  $region15: #{bert_encoder_forward.1} parent=0 // pred_check_branch
    %21 = sbr.rel (0) target = $region17
  $region16: #{bert_encoder_forward.1} parent=0 // pred_region
    _
  $region17: #{bert_encoder_forward.1} parent=0 // pred_fallthru
    _
  // Predicated region
  $region18: #{bert_encoder_forward.1} parent=0 // pred_check
    _
  $region19: #{bert_encoder_forward.1} parent=0 // pred_check_branch
    %23 = sbr.rel (0) target = $region21
  $region20: #{bert_encoder_forward.1} parent=0 // pred_region
    _
  $region21: #{bert_encoder_forward.1} parent=0 // pred_fallthru
    _
  // Predicated region
  $region22: #{bert_encoder_forward.1} parent=0 // pred_check
    _
  $region23: #{bert_encoder_forward.1} parent=0 // pred_check_branch
    %25 = sbr.rel (0) target = $region25
  $region24: #{bert_encoder_forward.1} parent=0 // pred_region
    _
  $region25: #{bert_encoder_forward.1} parent=0 // pred_fallthru
    _
  // Predicated region
  $region26: #{bert_encoder_forward.1} parent=0 // pred_check
    _
  $region27: #{bert_encoder_forward.1} parent=0 // pred_check_branch
    %27 = sbr.rel (0) target = $region29
  $region28: #{bert_encoder_forward.1} parent=0 // pred_region
    _
  $region29: #{bert_encoder_forward.1} parent=0 // pred_fallthru
    _
  // Predicated region
  $region30: #{bert_encoder_forward.1} parent=0 // pred_check
    _
  $region31: #{bert_encoder_forward.1} parent=0 // pred_check_branch
    %29 = sbr.rel (0) target = $region33
  $region32: #{bert_encoder_forward.1} parent=0 // pred_region
    _
  $region33: #{bert_encoder_forward.1} parent=0 // pred_fallthru
    _
  // Predicated region
  $region34: #{bert_encoder_forward.1} parent=0 // pred_check
    _
  $region35: #{bert_encoder_forward.1} parent=0 // pred_check_branch
    %31 = sbr.rel (0) target = $region37
  $region36: #{bert_encoder_forward.1} parent=0 // pred_region
    _
  $region37: #{bert_encoder_forward.1} parent=0 // pred_fallthru
    _
  %v32 = vld [vmem:[%s0] sm:$0xff]
  %v33 = vld [vmem:[%s0 + $0x8] sm:$0xff]
  %v34 = vld [vmem:[%s2] sm:$0x1]
  %v35 = vld [vmem:[%s2 + $0x1] sm:$0x1]
  %vm36 = vcmask 261120
  %v37 = vsel %vm36, %v32, 0.0
  %38 = vadd.xlane.f32.xlu0 %v37
  %v39 = vpop.xlane.xlu0 %38
  %v40 = vsel %vm36, %v33, 0.0
  %41 = vadd.xlane.f32.xlu0 %v40
  %v42 = vpop.xlane.xlu0 %41
  %v43 = vrcp.pop 32.0
  %v44 = vmul.f32 32.0, %v43
  %v45 = vsub.f32 1.0, %v44
  %v46 = vmul.f32 %v43, %v45
  %v47 = vadd.f32 %v43, %v46
  %vm48 = vweird.f32 %v43
  %v49 = vsel %vm48, %v43, %v47
  %v50 = vmul.f32 %v39, %v49
  %v51 = vmul.f32 %v42, %v49
  %v52 = vsub.f32 %v32, %v50
  %v53 = vsub.f32 %v33, %v51
  %v54 = vmul.f32 %v52, %v52
  %v55 = vmul.f32 %v53, %v53
  %v56 = vsel %vm36, %v54, 0.0
  %57 = vadd.xlane.f32.xlu0 %v56
  %v58 = vpop.xlane.xlu0 %57
  %v59 = vsel %vm36, %v55, 0.0
  %60 = vadd.xlane.f32.xlu0 %v59
  %v61 = vpop.xlane.xlu0 %60
  %v62 = vmul.f32 %v58, %v49
  %v63 = vmul.f32 %v61, %v49
  %v64 = vadd.f32 %v62, 1e-12
  %v65 = vadd.f32 %v63, 1e-12
  %v66 = vrsqrt.pop %v64
  %v67 = vmul.f32 %v66, %v64
  %v68 = vmul.f32 %v67, %v66
  %v69 = vmul.f32 0.5, %v68
  %v70 = vsub.f32 1.5, %v69
  %v71 = vmul.f32 %v66, %v70
  %vm72 = vweird.f32 %v64
  %vm73 = vweird.f32 %v66
  %vm74 = vmor %vm72, %vm73
  %v75 = vsel %vm74, %v66, %v71
  %v76 = vrsqrt.pop %v65
  %v77 = vmul.f32 %v76, %v65
  %v78 = vmul.f32 %v77, %v76
  %v79 = vmul.f32 0.5, %v78
  %v80 = vsub.f32 1.5, %v79
  %v81 = vmul.f32 %v76, %v80
  %vm82 = vweird.f32 %v65
  %vm83 = vweird.f32 %v76
  %vm84 = vmor %vm82, %vm83
  %v85 = vsel %vm84, %v76, %v81
  %v86 = vmul.f32 %v52, %v75
  %v87 = vmul.f32 %v53, %v85
  %v88 = vperm.slane %v34, 0
  %v89 = vmul.f32 %v86, %v88
  %v90 = vmul.f32 %v87, %v88
  %v91 = vperm.slane %v35, 0
  %v92 = vadd.f32 %v89, %v91
  %v93 = vadd.f32 %v90, %v91
  %v94 = vld [vmem:[%s1] sm:$0x1]
  %v95 = vld [vmem:[%s1 + $0x1] sm:$0x1]
  %v96 = vld [vmem:[%s8] sm:$0xff]
  %v97 = vld [vmem:[%s4] sm:$0xff]
  %v98 = vld [vmem:[%s4 + $0x8] sm:$0xff]
  %v99 = vld [vmem:[%s4 + $0x10] sm:$0xff]
  %v100 = vld [vmem:[%s4 + $0x18] sm:$0xff]
  %v101 = vperm.slane %v96, 0
  %v103 = vsel %vm36, %v92, 0
  %v106 = vsel %vm36, %v93, 0
  %108 = vmatpush.msra.mxu0 0.0
  %109 = vmatpush.msra.mxu0 0.0
  %110 = vmatpush.msra.mxu0 0.0
  %111 = vmatpush.msra.mxu0 0.0
  %112 = vmatpush.msra.mxu0 0.0
  %113 = vmatpush.msra.mxu0 0.0
  %114 = vmatpush.msra.mxu0 0.0
  %115 = vmatpush.msra.mxu0 0.0
  %116 = vmatpush.msra.mxu0 0.0
  %117 = vmatpush.msra.mxu0 0.0
  %118 = vmatpush.msra.mxu0 0.0
  %119 = vmatpush.msra.mxu0 0.0
  %120 = vmatpush.msra.mxu0 %v100
  %121 = vmatpush.msra.mxu0 %v99
  %122 = vmatpush.msra.mxu0 %v98
  %123 = vmatpush.msra.mxu0 %v97
  %124 = vmatmul.f32.gmra.mxu0 %v103
  %v125 = vpop.f32.mrf.mxu0
  %v126 = vadd.f32 %v101, %v125
  %127 = vmatmul.f32.gmra.mxu0 %v106
  %v128 = vpop.f32.mrf.mxu0
  %v129 = vadd.f32 %v101, %v128
  %130 = vdwg.mxu0
  %v133 = vperm.slane %v94, 0
  %v134 = vperm.slane %v95, 0
  %138 = vrot.lane.b32.xlu0 %v126, 96
  %v139 = vpop.permute.xlu0 %138
  %vm140 = vcmask 130048
  %v141 = vsel %vm140, %v126, 0
  %v143 = vsel %vm140, %v139, 0
  %145 = vmatpush.xpose.msra.mxu0 0.0
  %146 = vmatpush.xpose.msra.mxu0 0.0
  %147 = vmatpush.xpose.msra.mxu0 0.0
  %148 = vmatpush.xpose.msra.mxu0 0.0
  %149 = vmatpush.xpose.msra.mxu0 0.0
  %150 = vmatpush.xpose.msra.mxu0 0.0
  %151 = vmatpush.xpose.msra.mxu0 0.0
  %152 = vmatpush.xpose.msra.mxu0 0.0
  %153 = vmatpush.xpose.msra.mxu0 0.0
  %154 = vmatpush.xpose.msra.mxu0 0.0
  %155 = vmatpush.xpose.msra.mxu0 0.0
  %156 = vmatpush.xpose.msra.mxu0 0.0
  %157 = vmatpush.xpose.msra.mxu0 0.0
  %158 = vmatpush.xpose.msra.mxu0 0.0
  %159 = vmatpush.xpose.msra.mxu0 0.0
  %160 = vmatpush.xpose.msra.mxu0 %v143
  %161 = vmatmul.f32.gmra.mxu0 %v141
  %v162 = vpop.f32.mrf.mxu0
  %v163 = vadd.f32 %v133, %v162
  %164 = vdwg.mxu0
  %166 = vrot.lane.b32.xlu0 %v129, 96
  %v167 = vpop.permute.xlu0 %166
  %v168 = vsel %vm140, %v129, 0
  %v170 = vsel %vm140, %v167, 0
  %172 = vmatpush.xpose.msra.mxu0 0.0
  %173 = vmatpush.xpose.msra.mxu0 0.0
  %174 = vmatpush.xpose.msra.mxu0 0.0
  %175 = vmatpush.xpose.msra.mxu0 0.0
  %176 = vmatpush.xpose.msra.mxu0 0.0
  %177 = vmatpush.xpose.msra.mxu0 0.0
  %178 = vmatpush.xpose.msra.mxu0 0.0
  %179 = vmatpush.xpose.msra.mxu0 0.0
  %180 = vmatpush.xpose.msra.mxu0 0.0
  %181 = vmatpush.xpose.msra.mxu0 0.0
  %182 = vmatpush.xpose.msra.mxu0 0.0
  %183 = vmatpush.xpose.msra.mxu0 0.0
  %184 = vmatpush.xpose.msra.mxu0 0.0
  %185 = vmatpush.xpose.msra.mxu0 0.0
  %186 = vmatpush.xpose.msra.mxu0 0.0
  %187 = vmatpush.xpose.msra.mxu0 %v170
  %188 = vmatmul.f32.gmra.mxu0 %v168
  %v189 = vpop.f32.mrf.mxu0
  %v190 = vadd.f32 %v134, %v189
  %191 = vdwg.mxu0
  %vm192 = vcmask 64512
  %v193 = vsel %vm192, %v163, -inf
  %194 = vmax.xlane.f32.xlu0 %v193
  %v195 = vpop.xlane.xlu0 %194
  %v196 = vsel %vm192, %v190, -inf
  %197 = vmax.xlane.f32.xlu0 %v196
  %v198 = vpop.xlane.xlu0 %197
  %v199 = vsub.f32 %v163, %v195
  %v200 = vsub.f32 %v190, %v198
  %v201 = vmul.f32 %v199, 1.442695
  %v202 = vpow.pop %v201
  %v203 = vmul.f32 %v200, 1.442695
  %v204 = vpow.pop %v203
  %v205 = vsel %vm192, %v202, 0.0
  %206 = vadd.xlane.f32.xlu0 %v205
  %v207 = vpop.xlane.xlu0 %206
  %v208 = vsel %vm192, %v204, 0.0
  %209 = vadd.xlane.f32.xlu0 %v208
  %v210 = vpop.xlane.xlu0 %209
  %v211 = vrcp.pop %v207
  %v212 = vrcp.pop %v210
  %v213 = vmul.f32 %v202, %v211
  %v214 = vmul.f32 %v204, %v212
  %215 = vrot.lane.b32.xlu0 %v126, 64
  %v216 = vpop.permute.xlu0 %215
  %v219 = vsel %vm192, %v213, 0
  %221 = vmatpush.msra.mxu0 0.0
  %222 = vmatpush.msra.mxu0 0.0
  %223 = vmatpush.msra.mxu0 0.0
  %224 = vmatpush.msra.mxu0 0.0
  %225 = vmatpush.msra.mxu0 0.0
  %226 = vmatpush.msra.mxu0 0.0
  %227 = vmatpush.msra.mxu0 0.0
  %228 = vmatpush.msra.mxu0 0.0
  %229 = vmatpush.msra.mxu0 0.0
  %230 = vmatpush.msra.mxu0 0.0
  %231 = vmatpush.msra.mxu0 0.0
  %232 = vmatpush.msra.mxu0 0.0
  %233 = vmatpush.msra.mxu0 0.0
  %234 = vmatpush.msra.mxu0 0.0
  %235 = vmatpush.msra.mxu0 0.0
  %236 = vmatpush.msra.mxu0 %v216
  %237 = vmatmul.f32.gmra.mxu0 %v219
  %v238 = vpop.f32.mrf.mxu0
  %v239 = vadd.f32 0.0, %v238
  %240 = vdwg.mxu0
  %241 = vrot.lane.b32.xlu0 %v129, 64
  %v242 = vpop.permute.xlu0 %241
  %v245 = vsel %vm192, %v214, 0
  %247 = vmatpush.msra.mxu0 0.0
  %248 = vmatpush.msra.mxu0 0.0
  %249 = vmatpush.msra.mxu0 0.0
  %250 = vmatpush.msra.mxu0 0.0
  %251 = vmatpush.msra.mxu0 0.0
  %252 = vmatpush.msra.mxu0 0.0
  %253 = vmatpush.msra.mxu0 0.0
  %254 = vmatpush.msra.mxu0 0.0
  %255 = vmatpush.msra.mxu0 0.0
  %256 = vmatpush.msra.mxu0 0.0
  %257 = vmatpush.msra.mxu0 0.0
  %258 = vmatpush.msra.mxu0 0.0
  %259 = vmatpush.msra.mxu0 0.0
  %260 = vmatpush.msra.mxu0 0.0
  %261 = vmatpush.msra.mxu0 0.0
  %262 = vmatpush.msra.mxu0 %v242
  %263 = vmatmul.f32.gmra.mxu0 %v245
  %v264 = vpop.f32.mrf.mxu0
  %v265 = vadd.f32 0.0, %v264
  %266 = vdwg.mxu0
  %267 = vrot.lane.b32.xlu0 %v126, 112
  %v268 = vpop.permute.xlu0 %267
  %269 = vrot.lane.b32.xlu0 %v126, 80
  %v270 = vpop.permute.xlu0 %269
  %v271 = vsel %vm140, %v268, 0
  %v273 = vsel %vm140, %v270, 0
  %275 = vmatpush.xpose.msra.mxu0 0.0
  %276 = vmatpush.xpose.msra.mxu0 0.0
  %277 = vmatpush.xpose.msra.mxu0 0.0
  %278 = vmatpush.xpose.msra.mxu0 0.0
  %279 = vmatpush.xpose.msra.mxu0 0.0
  %280 = vmatpush.xpose.msra.mxu0 0.0
  %281 = vmatpush.xpose.msra.mxu0 0.0
  %282 = vmatpush.xpose.msra.mxu0 0.0
  %283 = vmatpush.xpose.msra.mxu0 0.0
  %284 = vmatpush.xpose.msra.mxu0 0.0
  %285 = vmatpush.xpose.msra.mxu0 0.0
  %286 = vmatpush.xpose.msra.mxu0 0.0
  %287 = vmatpush.xpose.msra.mxu0 0.0
  %288 = vmatpush.xpose.msra.mxu0 0.0
  %289 = vmatpush.xpose.msra.mxu0 0.0
  %290 = vmatpush.xpose.msra.mxu0 %v273
  %291 = vmatmul.f32.gmra.mxu0 %v271
  %v292 = vpop.f32.mrf.mxu0
  %v293 = vadd.f32 %v133, %v292
  %294 = vdwg.mxu0
  %295 = vrot.lane.b32.xlu0 %v129, 112
  %v296 = vpop.permute.xlu0 %295
  %297 = vrot.lane.b32.xlu0 %v129, 80
  %v298 = vpop.permute.xlu0 %297
  %v299 = vsel %vm140, %v296, 0
  %v301 = vsel %vm140, %v298, 0
  %303 = vmatpush.xpose.msra.mxu0 0.0
  %304 = vmatpush.xpose.msra.mxu0 0.0
  %305 = vmatpush.xpose.msra.mxu0 0.0
  %306 = vmatpush.xpose.msra.mxu0 0.0
  %307 = vmatpush.xpose.msra.mxu0 0.0
  %308 = vmatpush.xpose.msra.mxu0 0.0
  %309 = vmatpush.xpose.msra.mxu0 0.0
  %310 = vmatpush.xpose.msra.mxu0 0.0
  %311 = vmatpush.xpose.msra.mxu0 0.0
  %312 = vmatpush.xpose.msra.mxu0 0.0
  %313 = vmatpush.xpose.msra.mxu0 0.0
  %314 = vmatpush.xpose.msra.mxu0 0.0
  %315 = vmatpush.xpose.msra.mxu0 0.0
  %316 = vmatpush.xpose.msra.mxu0 0.0
  %317 = vmatpush.xpose.msra.mxu0 0.0
  %318 = vmatpush.xpose.msra.mxu0 %v301
  %319 = vmatmul.f32.gmra.mxu0 %v299
  %v320 = vpop.f32.mrf.mxu0
  %v321 = vadd.f32 %v134, %v320
  %322 = vdwg.mxu0
  %v323 = vsel %vm192, %v293, -inf
  %324 = vmax.xlane.f32.xlu0 %v323
  %v325 = vpop.xlane.xlu0 %324
  %v326 = vsel %vm192, %v321, -inf
  %327 = vmax.xlane.f32.xlu0 %v326
  %v328 = vpop.xlane.xlu0 %327
  %v329 = vsub.f32 %v293, %v325
  %v330 = vsub.f32 %v321, %v328
  %v331 = vmul.f32 %v329, 1.442695
  %v332 = vpow.pop %v331
  %v333 = vmul.f32 %v330, 1.442695
  %v334 = vpow.pop %v333
  %v335 = vsel %vm192, %v332, 0.0
  %336 = vadd.xlane.f32.xlu0 %v335
  %v337 = vpop.xlane.xlu0 %336
  %v338 = vsel %vm192, %v334, 0.0
  %339 = vadd.xlane.f32.xlu0 %v338
  %v340 = vpop.xlane.xlu0 %339
  %v341 = vrcp.pop %v337
  %v342 = vrcp.pop %v340
  %v343 = vmul.f32 %v332, %v341
  %v344 = vmul.f32 %v334, %v342
  %345 = vrot.lane.b32.xlu0 %v126, 48
  %v346 = vpop.permute.xlu0 %345
  %v349 = vsel %vm192, %v343, 0
  %351 = vmatpush.msra.mxu0 0.0
  %352 = vmatpush.msra.mxu0 0.0
  %353 = vmatpush.msra.mxu0 0.0
  %354 = vmatpush.msra.mxu0 0.0
  %355 = vmatpush.msra.mxu0 0.0
  %356 = vmatpush.msra.mxu0 0.0
  %357 = vmatpush.msra.mxu0 0.0
  %358 = vmatpush.msra.mxu0 0.0
  %359 = vmatpush.msra.mxu0 0.0
  %360 = vmatpush.msra.mxu0 0.0
  %361 = vmatpush.msra.mxu0 0.0
  %362 = vmatpush.msra.mxu0 0.0
  %363 = vmatpush.msra.mxu0 0.0
  %364 = vmatpush.msra.mxu0 0.0
  %365 = vmatpush.msra.mxu0 0.0
  %366 = vmatpush.msra.mxu0 %v346
  %367 = vmatmul.f32.gmra.mxu0 %v349
  %v368 = vpop.f32.mrf.mxu0
  %v369 = vadd.f32 0.0, %v368
  %370 = vdwg.mxu0
  %371 = vrot.lane.b32.xlu0 %v129, 48
  %v372 = vpop.permute.xlu0 %371
  %v375 = vsel %vm192, %v344, 0
  %377 = vmatpush.msra.mxu0 0.0
  %378 = vmatpush.msra.mxu0 0.0
  %379 = vmatpush.msra.mxu0 0.0
  %380 = vmatpush.msra.mxu0 0.0
  %381 = vmatpush.msra.mxu0 0.0
  %382 = vmatpush.msra.mxu0 0.0
  %383 = vmatpush.msra.mxu0 0.0
  %384 = vmatpush.msra.mxu0 0.0
  %385 = vmatpush.msra.mxu0 0.0
  %386 = vmatpush.msra.mxu0 0.0
  %387 = vmatpush.msra.mxu0 0.0
  %388 = vmatpush.msra.mxu0 0.0
  %389 = vmatpush.msra.mxu0 0.0
  %390 = vmatpush.msra.mxu0 0.0
  %391 = vmatpush.msra.mxu0 0.0
  %392 = vmatpush.msra.mxu0 %v372
  %393 = vmatmul.f32.gmra.mxu0 %v375
  %v394 = vpop.f32.mrf.mxu0
  %v395 = vadd.f32 0.0, %v394
  %396 = vdwg.mxu0
  %399 = vrot.lane.b32.xlu0 %v369, 16
  %v400 = vpop.permute.xlu0 %399
  %401 = vrot.lane.b32.xlu0 %v395, 16
  %v402 = vpop.permute.xlu0 %401
  %v405 = vsel %vm140, %v239, %v400
  %v406 = vsel %vm140, %v265, %v402
  %v407 = vld [vmem:[%s5] sm:$0xff]
  %v408 = vld [vmem:[%s5 + $0x8] sm:$0xff]
  %v409 = vld [vmem:[%s5 + $0x10] sm:$0xff]
  %v410 = vld [vmem:[%s5 + $0x18] sm:$0xff]
  %v411 = vperm.slane %v96, 2
  %v413 = vsel %vm36, %v405, 0
  %v416 = vsel %vm36, %v406, 0
  %418 = vmatpush.msra.mxu0 0.0
  %419 = vmatpush.msra.mxu0 0.0
  %420 = vmatpush.msra.mxu0 0.0
  %421 = vmatpush.msra.mxu0 0.0
  %422 = vmatpush.msra.mxu0 0.0
  %423 = vmatpush.msra.mxu0 0.0
  %424 = vmatpush.msra.mxu0 0.0
  %425 = vmatpush.msra.mxu0 0.0
  %426 = vmatpush.msra.mxu0 0.0
  %427 = vmatpush.msra.mxu0 0.0
  %428 = vmatpush.msra.mxu0 0.0
  %429 = vmatpush.msra.mxu0 0.0
  %430 = vmatpush.msra.mxu0 %v410
  %431 = vmatpush.msra.mxu0 %v409
  %432 = vmatpush.msra.mxu0 %v408
  %433 = vmatpush.msra.mxu0 %v407
  %434 = vmatmul.f32.gmra.mxu0 %v413
  %v435 = vpop.f32.mrf.mxu0
  %v436 = vadd.f32 %v411, %v435
  %437 = vmatmul.f32.gmra.mxu0 %v416
  %v438 = vpop.f32.mrf.mxu0
  %v439 = vadd.f32 %v411, %v438
  %440 = vdwg.mxu0
  %v441 = vadd.f32 %v436, %v92
  %v442 = vadd.f32 %v439, %v93
  %v443 = vsel %vm36, %v441, 0.0
  %444 = vadd.xlane.f32.xlu0 %v443
  %v445 = vpop.xlane.xlu0 %444
  %v446 = vsel %vm36, %v442, 0.0
  %447 = vadd.xlane.f32.xlu0 %v446
  %v448 = vpop.xlane.xlu0 %447
  %v449 = vmul.f32 %v445, %v49
  %v450 = vmul.f32 %v448, %v49
  %v451 = vsub.f32 %v441, %v449
  %v452 = vsub.f32 %v442, %v450
  %v453 = vmul.f32 %v451, %v451
  %v454 = vmul.f32 %v452, %v452
  %v455 = vsel %vm36, %v453, 0.0
  %456 = vadd.xlane.f32.xlu0 %v455
  %v457 = vpop.xlane.xlu0 %456
  %v458 = vsel %vm36, %v454, 0.0
  %459 = vadd.xlane.f32.xlu0 %v458
  %v460 = vpop.xlane.xlu0 %459
  %v461 = vmul.f32 %v457, %v49
  %v462 = vmul.f32 %v460, %v49
  %v463 = vadd.f32 %v461, 1e-12
  %v464 = vadd.f32 %v462, 1e-12
  %v465 = vrsqrt.pop %v463
  %v466 = vmul.f32 %v465, %v463
  %v467 = vmul.f32 %v466, %v465
  %v468 = vmul.f32 0.5, %v467
  %v469 = vsub.f32 1.5, %v468
  %v470 = vmul.f32 %v465, %v469
  %vm471 = vweird.f32 %v463
  %vm472 = vweird.f32 %v465
  %vm473 = vmor %vm471, %vm472
  %v474 = vsel %vm473, %v465, %v470
  %v475 = vrsqrt.pop %v464
  %v476 = vmul.f32 %v475, %v464
  %v477 = vmul.f32 %v476, %v475
  %v478 = vmul.f32 0.5, %v477
  %v479 = vsub.f32 1.5, %v478
  %v480 = vmul.f32 %v475, %v479
  %vm481 = vweird.f32 %v464
  %vm482 = vweird.f32 %v475
  %vm483 = vmor %vm481, %vm482
  %v484 = vsel %vm483, %v475, %v480
  %v485 = vmul.f32 %v451, %v474
  %v486 = vmul.f32 %v452, %v484
  %v487 = vperm.slane %v96, 3
  %v488 = vmul.f32 %v485, %v487
  %v489 = vmul.f32 %v486, %v487
  %v490 = vperm.slane %v96, 4
  %v491 = vadd.f32 %v488, %v490
  %v492 = vadd.f32 %v489, %v490
  %v493 = vld [vmem:[%s6] sm:$0xff]
  %v494 = vld [vmem:[%s6 + $0x8] sm:$0xff]
  %v495 = vld [vmem:[%s6 + $0x10] sm:$0xff]
  %v496 = vld [vmem:[%s6 + $0x18] sm:$0xff]
  %v497 = vperm.slane %v96, 1
  %v499 = vsel %vm36, %v491, 0
  %v502 = vsel %vm36, %v492, 0
  %504 = vmatpush.msra.mxu0 0.0
  %505 = vmatpush.msra.mxu0 0.0
  %506 = vmatpush.msra.mxu0 0.0
  %507 = vmatpush.msra.mxu0 0.0
  %508 = vmatpush.msra.mxu0 0.0
  %509 = vmatpush.msra.mxu0 0.0
  %510 = vmatpush.msra.mxu0 0.0
  %511 = vmatpush.msra.mxu0 0.0
  %512 = vmatpush.msra.mxu0 0.0
  %513 = vmatpush.msra.mxu0 0.0
  %514 = vmatpush.msra.mxu0 0.0
  %515 = vmatpush.msra.mxu0 0.0
  %516 = vmatpush.msra.mxu0 %v496
  %517 = vmatpush.msra.mxu0 %v495
  %518 = vmatpush.msra.mxu0 %v494
  %519 = vmatpush.msra.mxu0 %v493
  %520 = vmatmul.f32.gmra.mxu0 %v499
  %v521 = vpop.f32.mrf.mxu0
  %v522 = vadd.f32 %v497, %v521
  %523 = vmatmul.f32.gmra.mxu0 %v502
  %v524 = vpop.f32.mrf.mxu0
  %v525 = vadd.f32 %v497, %v524
  %526 = vdwg.mxu0
  %v527 = vmul.f32 %v522, 0.5
  %v528 = vmul.f32 %v525, 0.5
  %v529 = vmul.f32 %v522, 0.044715
  %v530 = vmul.f32 %v525, 0.044715
  %v531 = vmul.f32 %v529, %v522
  %v532 = vmul.f32 %v530, %v525
  %v533 = vmul.f32 %v531, %v522
  %v534 = vmul.f32 %v532, %v525
  %v535 = vadd.f32 %v522, %v533
  %v536 = vadd.f32 %v525, %v534
  %v537 = vmul.f32 %v535, 0.7978846
  %v538 = vmul.f32 %v536, 0.7978846
  %v539 = vtanh.pop %v537
  %v540 = vtanh.pop %v538
  %v541 = vadd.f32 %v539, 1.0
  %v542 = vadd.f32 %v540, 1.0
  %v543 = vmul.f32 %v527, %v541
  %v544 = vmul.f32 %v528, %v542
  %v545 = vld [vmem:[%s7] sm:$0xff]
  %v546 = vld [vmem:[%s7 + $0x8] sm:$0xff]
  %v547 = vld [vmem:[%s7 + $0x10] sm:$0xff]
  %v548 = vld [vmem:[%s7 + $0x18] sm:$0xff]
  %v549 = vld [vmem:[%s7 + $0x20] sm:$0xff]
  %v550 = vld [vmem:[%s7 + $0x28] sm:$0xff]
  %v551 = vld [vmem:[%s7 + $0x30] sm:$0xff]
  %v552 = vld [vmem:[%s7 + $0x38] sm:$0xff]
  %v553 = vld [vmem:[%s7 + $0x40] sm:$0xff]
  %v554 = vld [vmem:[%s7 + $0x48] sm:$0xff]
  %v555 = vld [vmem:[%s7 + $0x50] sm:$0xff]
  %v556 = vld [vmem:[%s7 + $0x58] sm:$0xff]
  %v557 = vld [vmem:[%s7 + $0x60] sm:$0xff]
  %v558 = vld [vmem:[%s7 + $0x68] sm:$0xff]
  %v559 = vld [vmem:[%s7 + $0x70] sm:$0xff]
  %v560 = vld [vmem:[%s7 + $0x78] sm:$0xff]
  %v561 = vperm.slane %v96, 5
  %562 = vmatpush.msra.mxu0 %v560
  %563 = vmatpush.msra.mxu0 %v559
  %564 = vmatpush.msra.mxu0 %v558
  %565 = vmatpush.msra.mxu0 %v557
  %566 = vmatpush.msra.mxu0 %v556
  %567 = vmatpush.msra.mxu0 %v555
  %568 = vmatpush.msra.mxu0 %v554
  %569 = vmatpush.msra.mxu0 %v553
  %570 = vmatpush.msra.mxu0 %v552
  %571 = vmatpush.msra.mxu0 %v551
  %572 = vmatpush.msra.mxu0 %v550
  %573 = vmatpush.msra.mxu0 %v549
  %574 = vmatpush.msra.mxu0 %v548
  %575 = vmatpush.msra.mxu0 %v547
  %576 = vmatpush.msra.mxu0 %v546
  %577 = vmatpush.msra.mxu0 %v545
  %578 = vmatmul.f32.gmra.mxu0 %v543
  %v579 = vpop.f32.mrf.mxu0
  %v580 = vadd.f32 %v561, %v579
  %581 = vmatmul.f32.gmra.mxu0 %v544
  %v582 = vpop.f32.mrf.mxu0
  %v583 = vadd.f32 %v561, %v582
  %584 = vdwg.mxu0
  %v585 = vadd.f32 %v580, %v491
  %v586 = vadd.f32 %v583, %v492
  %v587 = vsel %vm36, %v585, 0.0
  %588 = vadd.xlane.f32.xlu0 %v587
  %v589 = vpop.xlane.xlu0 %588
  %v590 = vsel %vm36, %v586, 0.0
  %591 = vadd.xlane.f32.xlu0 %v590
  %v592 = vpop.xlane.xlu0 %591
  %v593 = vmul.f32 %v589, %v49
  %v594 = vmul.f32 %v592, %v49
  %v595 = vsub.f32 %v585, %v593
  %v596 = vsub.f32 %v586, %v594
  %v597 = vmul.f32 %v595, %v595
  %v598 = vmul.f32 %v596, %v596
  %v599 = vsel %vm36, %v597, 0.0
  %600 = vadd.xlane.f32.xlu0 %v599
  %v601 = vpop.xlane.xlu0 %600
  %v602 = vsel %vm36, %v598, 0.0
  %603 = vadd.xlane.f32.xlu0 %v602
  %v604 = vpop.xlane.xlu0 %603
  %v605 = vmul.f32 %v601, %v49
  %v606 = vmul.f32 %v604, %v49
  %v607 = vadd.f32 %v605, 1e-12
  %v608 = vadd.f32 %v606, 1e-12
  %v609 = vrsqrt.pop %v607
  %v610 = vmul.f32 %v609, %v607
  %v611 = vmul.f32 %v610, %v609
  %v612 = vmul.f32 0.5, %v611
  %v613 = vsub.f32 1.5, %v612
  %v614 = vmul.f32 %v609, %v613
  %vm615 = vweird.f32 %v607
  %vm616 = vweird.f32 %v609
  %vm617 = vmor %vm615, %vm616
  %v618 = vsel %vm617, %v609, %v614
  %v619 = vrsqrt.pop %v608
  %v620 = vmul.f32 %v619, %v608
  %v621 = vmul.f32 %v620, %v619
  %v622 = vmul.f32 0.5, %v621
  %v623 = vsub.f32 1.5, %v622
  %v624 = vmul.f32 %v619, %v623
  %vm625 = vweird.f32 %v608
  %vm626 = vweird.f32 %v619
  %vm627 = vmor %vm625, %vm626
  %v628 = vsel %vm627, %v619, %v624
  %v629 = vmul.f32 %v595, %v618
  %v630 = vmul.f32 %v596, %v628
  %v631 = vperm.slane %v96, 6
  %v632 = vmul.f32 %v629, %v631
  %v633 = vmul.f32 %v630, %v631
  %v634 = vperm.slane %v96, 7
  %v635 = vadd.f32 %v632, %v634
  %v636 = vadd.f32 %v633, %v634
  %s637 = scalar_lea.vmem %s8, 8
  %v638 = vld [vmem:[%s637] sm:$0xff]
  %s639 = scalar_lea.vmem %s4, 32
  %v640 = vld [vmem:[%s639] sm:$0xff]
  %v641 = vld [vmem:[%s639 + $0x8] sm:$0xff]
  %v642 = vld [vmem:[%s639 + $0x10] sm:$0xff]
  %v643 = vld [vmem:[%s639 + $0x18] sm:$0xff]
  %v644 = vperm.slane %v638, 0
  %v646 = vsel %vm36, %v635, 0
  %v649 = vsel %vm36, %v636, 0
  %651 = vmatpush.msra.mxu0 0.0
  %652 = vmatpush.msra.mxu0 0.0
  %653 = vmatpush.msra.mxu0 0.0
  %654 = vmatpush.msra.mxu0 0.0
  %655 = vmatpush.msra.mxu0 0.0
  %656 = vmatpush.msra.mxu0 0.0
  %657 = vmatpush.msra.mxu0 0.0
  %658 = vmatpush.msra.mxu0 0.0
  %659 = vmatpush.msra.mxu0 0.0
  %660 = vmatpush.msra.mxu0 0.0
  %661 = vmatpush.msra.mxu0 0.0
  %662 = vmatpush.msra.mxu0 0.0
  %663 = vmatpush.msra.mxu0 %v643
  %664 = vmatpush.msra.mxu0 %v642
  %665 = vmatpush.msra.mxu0 %v641
  %666 = vmatpush.msra.mxu0 %v640
  %667 = vmatmul.f32.gmra.mxu0 %v646
  %v668 = vpop.f32.mrf.mxu0
  %v669 = vadd.f32 %v644, %v668
  %670 = vmatmul.f32.gmra.mxu0 %v649
  %v671 = vpop.f32.mrf.mxu0
  %v672 = vadd.f32 %v644, %v671
  %673 = vdwg.mxu0
  %675 = vrot.lane.b32.xlu0 %v669, 96
  %v676 = vpop.permute.xlu0 %675
  %v677 = vsel %vm140, %v669, 0
  %v679 = vsel %vm140, %v676, 0
  %681 = vmatpush.xpose.msra.mxu0 0.0
  %682 = vmatpush.xpose.msra.mxu0 0.0
  %683 = vmatpush.xpose.msra.mxu0 0.0
  %684 = vmatpush.xpose.msra.mxu0 0.0
  %685 = vmatpush.xpose.msra.mxu0 0.0
  %686 = vmatpush.xpose.msra.mxu0 0.0
  %687 = vmatpush.xpose.msra.mxu0 0.0
  %688 = vmatpush.xpose.msra.mxu0 0.0
  %689 = vmatpush.xpose.msra.mxu0 0.0
  %690 = vmatpush.xpose.msra.mxu0 0.0
  %691 = vmatpush.xpose.msra.mxu0 0.0
  %692 = vmatpush.xpose.msra.mxu0 0.0
  %693 = vmatpush.xpose.msra.mxu0 0.0
  %694 = vmatpush.xpose.msra.mxu0 0.0
  %695 = vmatpush.xpose.msra.mxu0 0.0
  %696 = vmatpush.xpose.msra.mxu0 %v679
  %697 = vmatmul.f32.gmra.mxu0 %v677
  %v698 = vpop.f32.mrf.mxu0
  %v699 = vadd.f32 %v133, %v698
  %700 = vdwg.mxu0
  %702 = vrot.lane.b32.xlu0 %v672, 96
  %v703 = vpop.permute.xlu0 %702
  %v704 = vsel %vm140, %v672, 0
  %v706 = vsel %vm140, %v703, 0
  %708 = vmatpush.xpose.msra.mxu0 0.0
  %709 = vmatpush.xpose.msra.mxu0 0.0
  %710 = vmatpush.xpose.msra.mxu0 0.0
  %711 = vmatpush.xpose.msra.mxu0 0.0
  %712 = vmatpush.xpose.msra.mxu0 0.0
  %713 = vmatpush.xpose.msra.mxu0 0.0
  %714 = vmatpush.xpose.msra.mxu0 0.0
  %715 = vmatpush.xpose.msra.mxu0 0.0
  %716 = vmatpush.xpose.msra.mxu0 0.0
  %717 = vmatpush.xpose.msra.mxu0 0.0
  %718 = vmatpush.xpose.msra.mxu0 0.0
  %719 = vmatpush.xpose.msra.mxu0 0.0
  %720 = vmatpush.xpose.msra.mxu0 0.0
  %721 = vmatpush.xpose.msra.mxu0 0.0
  %722 = vmatpush.xpose.msra.mxu0 0.0
  %723 = vmatpush.xpose.msra.mxu0 %v706
  %724 = vmatmul.f32.gmra.mxu0 %v704
  %v725 = vpop.f32.mrf.mxu0
  %v726 = vadd.f32 %v134, %v725
  %727 = vdwg.mxu0
  %v728 = vsel %vm192, %v699, -inf
  %729 = vmax.xlane.f32.xlu0 %v728
  %v730 = vpop.xlane.xlu0 %729
  %v731 = vsel %vm192, %v726, -inf
  %732 = vmax.xlane.f32.xlu0 %v731
  %v733 = vpop.xlane.xlu0 %732
  %v734 = vsub.f32 %v699, %v730
  %v735 = vsub.f32 %v726, %v733
  %v736 = vmul.f32 %v734, 1.442695
  %v737 = vpow.pop %v736
  %v738 = vmul.f32 %v735, 1.442695
  %v739 = vpow.pop %v738
  %v740 = vsel %vm192, %v737, 0.0
  %741 = vadd.xlane.f32.xlu0 %v740
  %v742 = vpop.xlane.xlu0 %741
  %v743 = vsel %vm192, %v739, 0.0
  %744 = vadd.xlane.f32.xlu0 %v743
  %v745 = vpop.xlane.xlu0 %744
  %v746 = vrcp.pop %v742
  %v747 = vrcp.pop %v745
  %v748 = vmul.f32 %v737, %v746
  %v749 = vmul.f32 %v739, %v747
  %750 = vrot.lane.b32.xlu0 %v669, 64
  %v751 = vpop.permute.xlu0 %750
  %v754 = vsel %vm192, %v748, 0
  %756 = vmatpush.msra.mxu0 0.0
  %757 = vmatpush.msra.mxu0 0.0
  %758 = vmatpush.msra.mxu0 0.0
  %759 = vmatpush.msra.mxu0 0.0
  %760 = vmatpush.msra.mxu0 0.0
  %761 = vmatpush.msra.mxu0 0.0
  %762 = vmatpush.msra.mxu0 0.0
  %763 = vmatpush.msra.mxu0 0.0
  %764 = vmatpush.msra.mxu0 0.0
  %765 = vmatpush.msra.mxu0 0.0
  %766 = vmatpush.msra.mxu0 0.0
  %767 = vmatpush.msra.mxu0 0.0
  %768 = vmatpush.msra.mxu0 0.0
  %769 = vmatpush.msra.mxu0 0.0
  %770 = vmatpush.msra.mxu0 0.0
  %771 = vmatpush.msra.mxu0 %v751
  %772 = vmatmul.f32.gmra.mxu0 %v754
  %v773 = vpop.f32.mrf.mxu0
  %v774 = vadd.f32 0.0, %v773
  %775 = vdwg.mxu0
  %776 = vrot.lane.b32.xlu0 %v672, 64
  %v777 = vpop.permute.xlu0 %776
  %v780 = vsel %vm192, %v749, 0
  %782 = vmatpush.msra.mxu0 0.0
  %783 = vmatpush.msra.mxu0 0.0
  %784 = vmatpush.msra.mxu0 0.0
  %785 = vmatpush.msra.mxu0 0.0
  %786 = vmatpush.msra.mxu0 0.0
  %787 = vmatpush.msra.mxu0 0.0
  %788 = vmatpush.msra.mxu0 0.0
  %789 = vmatpush.msra.mxu0 0.0
  %790 = vmatpush.msra.mxu0 0.0
  %791 = vmatpush.msra.mxu0 0.0
  %792 = vmatpush.msra.mxu0 0.0
  %793 = vmatpush.msra.mxu0 0.0
  %794 = vmatpush.msra.mxu0 0.0
  %795 = vmatpush.msra.mxu0 0.0
  %796 = vmatpush.msra.mxu0 0.0
  %797 = vmatpush.msra.mxu0 %v777
  %798 = vmatmul.f32.gmra.mxu0 %v780
  %v799 = vpop.f32.mrf.mxu0
  %v800 = vadd.f32 0.0, %v799
  %801 = vdwg.mxu0
  %802 = vrot.lane.b32.xlu0 %v669, 112
  %v803 = vpop.permute.xlu0 %802
  %804 = vrot.lane.b32.xlu0 %v669, 80
  %v805 = vpop.permute.xlu0 %804
  %v806 = vsel %vm140, %v803, 0
  %v808 = vsel %vm140, %v805, 0
  %810 = vmatpush.xpose.msra.mxu0 0.0
  %811 = vmatpush.xpose.msra.mxu0 0.0
  %812 = vmatpush.xpose.msra.mxu0 0.0
  %813 = vmatpush.xpose.msra.mxu0 0.0
  %814 = vmatpush.xpose.msra.mxu0 0.0
  %815 = vmatpush.xpose.msra.mxu0 0.0
  %816 = vmatpush.xpose.msra.mxu0 0.0
  %817 = vmatpush.xpose.msra.mxu0 0.0
  %818 = vmatpush.xpose.msra.mxu0 0.0
  %819 = vmatpush.xpose.msra.mxu0 0.0
  %820 = vmatpush.xpose.msra.mxu0 0.0
  %821 = vmatpush.xpose.msra.mxu0 0.0
  %822 = vmatpush.xpose.msra.mxu0 0.0
  %823 = vmatpush.xpose.msra.mxu0 0.0
  %824 = vmatpush.xpose.msra.mxu0 0.0
  %825 = vmatpush.xpose.msra.mxu0 %v808
  %826 = vmatmul.f32.gmra.mxu0 %v806
  %v827 = vpop.f32.mrf.mxu0
  %v828 = vadd.f32 %v133, %v827
  %829 = vdwg.mxu0
  %830 = vrot.lane.b32.xlu0 %v672, 112
  %v831 = vpop.permute.xlu0 %830
  %832 = vrot.lane.b32.xlu0 %v672, 80
  %v833 = vpop.permute.xlu0 %832
  %v834 = vsel %vm140, %v831, 0
  %v836 = vsel %vm140, %v833, 0
  %838 = vmatpush.xpose.msra.mxu0 0.0
  %839 = vmatpush.xpose.msra.mxu0 0.0
  %840 = vmatpush.xpose.msra.mxu0 0.0
  %841 = vmatpush.xpose.msra.mxu0 0.0
  %842 = vmatpush.xpose.msra.mxu0 0.0
  %843 = vmatpush.xpose.msra.mxu0 0.0
  %844 = vmatpush.xpose.msra.mxu0 0.0
  %845 = vmatpush.xpose.msra.mxu0 0.0
  %846 = vmatpush.xpose.msra.mxu0 0.0
  %847 = vmatpush.xpose.msra.mxu0 0.0
  %848 = vmatpush.xpose.msra.mxu0 0.0
  %849 = vmatpush.xpose.msra.mxu0 0.0
  %850 = vmatpush.xpose.msra.mxu0 0.0
  %851 = vmatpush.xpose.msra.mxu0 0.0
  %852 = vmatpush.xpose.msra.mxu0 0.0
  %853 = vmatpush.xpose.msra.mxu0 %v836
  %854 = vmatmul.f32.gmra.mxu0 %v834
  %v855 = vpop.f32.mrf.mxu0
  %v856 = vadd.f32 %v134, %v855
  %857 = vdwg.mxu0
  %v858 = vsel %vm192, %v828, -inf
  %859 = vmax.xlane.f32.xlu0 %v858
  %v860 = vpop.xlane.xlu0 %859
  %v861 = vsel %vm192, %v856, -inf
  %862 = vmax.xlane.f32.xlu0 %v861
  %v863 = vpop.xlane.xlu0 %862
  %v864 = vsub.f32 %v828, %v860
  %v865 = vsub.f32 %v856, %v863
  %v866 = vmul.f32 %v864, 1.442695
  %v867 = vpow.pop %v866
  %v868 = vmul.f32 %v865, 1.442695
  %v869 = vpow.pop %v868
  %v870 = vsel %vm192, %v867, 0.0
  %871 = vadd.xlane.f32.xlu0 %v870
  %v872 = vpop.xlane.xlu0 %871
  %v873 = vsel %vm192, %v869, 0.0
  %874 = vadd.xlane.f32.xlu0 %v873
  %v875 = vpop.xlane.xlu0 %874
  %v876 = vrcp.pop %v872
  %v877 = vrcp.pop %v875
  %v878 = vmul.f32 %v867, %v876
  %v879 = vmul.f32 %v869, %v877
  %880 = vrot.lane.b32.xlu0 %v669, 48
  %v881 = vpop.permute.xlu0 %880
  %v884 = vsel %vm192, %v878, 0
  %886 = vmatpush.msra.mxu0 0.0
  %887 = vmatpush.msra.mxu0 0.0
  %888 = vmatpush.msra.mxu0 0.0
  %889 = vmatpush.msra.mxu0 0.0
  %890 = vmatpush.msra.mxu0 0.0
  %891 = vmatpush.msra.mxu0 0.0
  %892 = vmatpush.msra.mxu0 0.0
  %893 = vmatpush.msra.mxu0 0.0
  %894 = vmatpush.msra.mxu0 0.0
  %895 = vmatpush.msra.mxu0 0.0
  %896 = vmatpush.msra.mxu0 0.0
  %897 = vmatpush.msra.mxu0 0.0
  %898 = vmatpush.msra.mxu0 0.0
  %899 = vmatpush.msra.mxu0 0.0
  %900 = vmatpush.msra.mxu0 0.0
  %901 = vmatpush.msra.mxu0 %v881
  %902 = vmatmul.f32.gmra.mxu0 %v884
  %v903 = vpop.f32.mrf.mxu0
  %v904 = vadd.f32 0.0, %v903
  %905 = vdwg.mxu0
  %906 = vrot.lane.b32.xlu0 %v672, 48
  %v907 = vpop.permute.xlu0 %906
  %v910 = vsel %vm192, %v879, 0
  %912 = vmatpush.msra.mxu0 0.0
  %913 = vmatpush.msra.mxu0 0.0
  %914 = vmatpush.msra.mxu0 0.0
  %915 = vmatpush.msra.mxu0 0.0
  %916 = vmatpush.msra.mxu0 0.0
  %917 = vmatpush.msra.mxu0 0.0
  %918 = vmatpush.msra.mxu0 0.0
  %919 = vmatpush.msra.mxu0 0.0
  %920 = vmatpush.msra.mxu0 0.0
  %921 = vmatpush.msra.mxu0 0.0
  %922 = vmatpush.msra.mxu0 0.0
  %923 = vmatpush.msra.mxu0 0.0
  %924 = vmatpush.msra.mxu0 0.0
  %925 = vmatpush.msra.mxu0 0.0
  %926 = vmatpush.msra.mxu0 0.0
  %927 = vmatpush.msra.mxu0 %v907
  %928 = vmatmul.f32.gmra.mxu0 %v910
  %v929 = vpop.f32.mrf.mxu0
  %v930 = vadd.f32 0.0, %v929
  %931 = vdwg.mxu0
  %934 = vrot.lane.b32.xlu0 %v904, 16
  %v935 = vpop.permute.xlu0 %934
  %936 = vrot.lane.b32.xlu0 %v930, 16
  %v937 = vpop.permute.xlu0 %936
  %v940 = vsel %vm140, %v774, %v935
  %v941 = vsel %vm140, %v800, %v937
  %s942 = scalar_lea.vmem %s5, 32
  %v943 = vld [vmem:[%s942] sm:$0xff]
  %v944 = vld [vmem:[%s942 + $0x8] sm:$0xff]
  %v945 = vld [vmem:[%s942 + $0x10] sm:$0xff]
  %v946 = vld [vmem:[%s942 + $0x18] sm:$0xff]
  %v947 = vperm.slane %v638, 2
  %v949 = vsel %vm36, %v940, 0
  %v952 = vsel %vm36, %v941, 0
  %954 = vmatpush.msra.mxu0 0.0
  %955 = vmatpush.msra.mxu0 0.0
  %956 = vmatpush.msra.mxu0 0.0
  %957 = vmatpush.msra.mxu0 0.0
  %958 = vmatpush.msra.mxu0 0.0
  %959 = vmatpush.msra.mxu0 0.0
  %960 = vmatpush.msra.mxu0 0.0
  %961 = vmatpush.msra.mxu0 0.0
  %962 = vmatpush.msra.mxu0 0.0
  %963 = vmatpush.msra.mxu0 0.0
  %964 = vmatpush.msra.mxu0 0.0
  %965 = vmatpush.msra.mxu0 0.0
  %966 = vmatpush.msra.mxu0 %v946
  %967 = vmatpush.msra.mxu0 %v945
  %968 = vmatpush.msra.mxu0 %v944
  %969 = vmatpush.msra.mxu0 %v943
  %970 = vmatmul.f32.gmra.mxu0 %v949
  %v971 = vpop.f32.mrf.mxu0
  %v972 = vadd.f32 %v947, %v971
  %973 = vmatmul.f32.gmra.mxu0 %v952
  %v974 = vpop.f32.mrf.mxu0
  %v975 = vadd.f32 %v947, %v974
  %976 = vdwg.mxu0
  %v977 = vadd.f32 %v972, %v635
  %v978 = vadd.f32 %v975, %v636
  %v979 = vsel %vm36, %v977, 0.0
  %980 = vadd.xlane.f32.xlu0 %v979
  %v981 = vpop.xlane.xlu0 %980
  %v982 = vsel %vm36, %v978, 0.0
  %983 = vadd.xlane.f32.xlu0 %v982
  %v984 = vpop.xlane.xlu0 %983
  %v985 = vmul.f32 %v981, %v49
  %v986 = vmul.f32 %v984, %v49
  %v987 = vsub.f32 %v977, %v985
  %v988 = vsub.f32 %v978, %v986
  %v989 = vmul.f32 %v987, %v987
  %v990 = vmul.f32 %v988, %v988
  %v991 = vsel %vm36, %v989, 0.0
  %992 = vadd.xlane.f32.xlu0 %v991
  %v993 = vpop.xlane.xlu0 %992
  %v994 = vsel %vm36, %v990, 0.0
  %995 = vadd.xlane.f32.xlu0 %v994
  %v996 = vpop.xlane.xlu0 %995
  %v997 = vmul.f32 %v993, %v49
  %v998 = vmul.f32 %v996, %v49
  %v999 = vadd.f32 %v997, 1e-12
  %v1000 = vadd.f32 %v998, 1e-12
  %v1001 = vrsqrt.pop %v999
  %v1002 = vmul.f32 %v1001, %v999
  %v1003 = vmul.f32 %v1002, %v1001
  %v1004 = vmul.f32 0.5, %v1003
  %v1005 = vsub.f32 1.5, %v1004
  %v1006 = vmul.f32 %v1001, %v1005
  %vm1007 = vweird.f32 %v999
  %vm1008 = vweird.f32 %v1001
  %vm1009 = vmor %vm1007, %vm1008
  %v1010 = vsel %vm1009, %v1001, %v1006
  %v1011 = vrsqrt.pop %v1000
  %v1012 = vmul.f32 %v1011, %v1000
  %v1013 = vmul.f32 %v1012, %v1011
  %v1014 = vmul.f32 0.5, %v1013
  %v1015 = vsub.f32 1.5, %v1014
  %v1016 = vmul.f32 %v1011, %v1015
  %vm1017 = vweird.f32 %v1000
  %vm1018 = vweird.f32 %v1011
  %vm1019 = vmor %vm1017, %vm1018
  %v1020 = vsel %vm1019, %v1011, %v1016
  %v1021 = vmul.f32 %v987, %v1010
  %v1022 = vmul.f32 %v988, %v1020
  %v1023 = vperm.slane %v638, 3
  %v1024 = vmul.f32 %v1021, %v1023
  %v1025 = vmul.f32 %v1022, %v1023
  %v1026 = vperm.slane %v638, 4
  %v1027 = vadd.f32 %v1024, %v1026
  %v1028 = vadd.f32 %v1025, %v1026
  %s1029 = scalar_lea.vmem %s6, 32
  %v1030 = vld [vmem:[%s1029] sm:$0xff]
  %v1031 = vld [vmem:[%s1029 + $0x8] sm:$0xff]
  %v1032 = vld [vmem:[%s1029 + $0x10] sm:$0xff]
  %v1033 = vld [vmem:[%s1029 + $0x18] sm:$0xff]
  %v1034 = vperm.slane %v638, 1
  %v1036 = vsel %vm36, %v1027, 0
  %v1039 = vsel %vm36, %v1028, 0
  %1041 = vmatpush.msra.mxu0 0.0
  %1042 = vmatpush.msra.mxu0 0.0
  %1043 = vmatpush.msra.mxu0 0.0
  %1044 = vmatpush.msra.mxu0 0.0
  %1045 = vmatpush.msra.mxu0 0.0
  %1046 = vmatpush.msra.mxu0 0.0
  %1047 = vmatpush.msra.mxu0 0.0
  %1048 = vmatpush.msra.mxu0 0.0
  %1049 = vmatpush.msra.mxu0 0.0
  %1050 = vmatpush.msra.mxu0 0.0
  %1051 = vmatpush.msra.mxu0 0.0
  %1052 = vmatpush.msra.mxu0 0.0
  %1053 = vmatpush.msra.mxu0 %v1033
  %1054 = vmatpush.msra.mxu0 %v1032
  %1055 = vmatpush.msra.mxu0 %v1031
  %1056 = vmatpush.msra.mxu0 %v1030
  %1057 = vmatmul.f32.gmra.mxu0 %v1036
  %v1058 = vpop.f32.mrf.mxu0
  %v1059 = vadd.f32 %v1034, %v1058
  %1060 = vmatmul.f32.gmra.mxu0 %v1039
  %v1061 = vpop.f32.mrf.mxu0
  %v1062 = vadd.f32 %v1034, %v1061
  %1063 = vdwg.mxu0
  %v1064 = vmul.f32 %v1059, 0.5
  %v1065 = vmul.f32 %v1062, 0.5
  %v1066 = vmul.f32 %v1059, 0.044715
  %v1067 = vmul.f32 %v1062, 0.044715
  %v1068 = vmul.f32 %v1066, %v1059
  %v1069 = vmul.f32 %v1067, %v1062
  %v1070 = vmul.f32 %v1068, %v1059
  %v1071 = vmul.f32 %v1069, %v1062
  %v1072 = vadd.f32 %v1059, %v1070
  %v1073 = vadd.f32 %v1062, %v1071
  %v1074 = vmul.f32 %v1072, 0.7978846
  %v1075 = vmul.f32 %v1073, 0.7978846
  %v1076 = vtanh.pop %v1074
  %v1077 = vtanh.pop %v1075
  %v1078 = vadd.f32 %v1076, 1.0
  %v1079 = vadd.f32 %v1077, 1.0
  %v1080 = vmul.f32 %v1064, %v1078
  %v1081 = vmul.f32 %v1065, %v1079
  %s1082 = scalar_lea.vmem %s7, 128
  %v1083 = vld [vmem:[%s1082] sm:$0xff]
  %v1084 = vld [vmem:[%s1082 + $0x8] sm:$0xff]
  %v1085 = vld [vmem:[%s1082 + $0x10] sm:$0xff]
  %v1086 = vld [vmem:[%s1082 + $0x18] sm:$0xff]
  %v1087 = vld [vmem:[%s1082 + $0x20] sm:$0xff]
  %v1088 = vld [vmem:[%s1082 + $0x28] sm:$0xff]
  %v1089 = vld [vmem:[%s1082 + $0x30] sm:$0xff]
  %v1090 = vld [vmem:[%s1082 + $0x38] sm:$0xff]
  %v1091 = vld [vmem:[%s1082 + $0x40] sm:$0xff]
  %v1092 = vld [vmem:[%s1082 + $0x48] sm:$0xff]
  %v1093 = vld [vmem:[%s1082 + $0x50] sm:$0xff]
  %v1094 = vld [vmem:[%s1082 + $0x58] sm:$0xff]
  %v1095 = vld [vmem:[%s1082 + $0x60] sm:$0xff]
  %v1096 = vld [vmem:[%s1082 + $0x68] sm:$0xff]
  %v1097 = vld [vmem:[%s1082 + $0x70] sm:$0xff]
  %v1098 = vld [vmem:[%s1082 + $0x78] sm:$0xff]
  %v1099 = vperm.slane %v638, 5
  %1100 = vmatpush.msra.mxu0 %v1098
  %1101 = vmatpush.msra.mxu0 %v1097
  %1102 = vmatpush.msra.mxu0 %v1096
  %1103 = vmatpush.msra.mxu0 %v1095
  %1104 = vmatpush.msra.mxu0 %v1094
  %1105 = vmatpush.msra.mxu0 %v1093
  %1106 = vmatpush.msra.mxu0 %v1092
  %1107 = vmatpush.msra.mxu0 %v1091
  %1108 = vmatpush.msra.mxu0 %v1090
  %1109 = vmatpush.msra.mxu0 %v1089
  %1110 = vmatpush.msra.mxu0 %v1088
  %1111 = vmatpush.msra.mxu0 %v1087
  %1112 = vmatpush.msra.mxu0 %v1086
  %1113 = vmatpush.msra.mxu0 %v1085
  %1114 = vmatpush.msra.mxu0 %v1084
  %1115 = vmatpush.msra.mxu0 %v1083
  %1116 = vmatmul.f32.gmra.mxu0 %v1080
  %v1117 = vpop.f32.mrf.mxu0
  %v1118 = vadd.f32 %v1099, %v1117
  %1119 = vmatmul.f32.gmra.mxu0 %v1081
  %v1120 = vpop.f32.mrf.mxu0
  %v1121 = vadd.f32 %v1099, %v1120
  %1122 = vdwg.mxu0
  %v1123 = vadd.f32 %v1118, %v1027
  %v1124 = vadd.f32 %v1121, %v1028
  %v1125 = vsel %vm36, %v1123, 0.0
  %1126 = vadd.xlane.f32.xlu0 %v1125
  %v1127 = vpop.xlane.xlu0 %1126
  %v1128 = vsel %vm36, %v1124, 0.0
  %1129 = vadd.xlane.f32.xlu0 %v1128
  %v1130 = vpop.xlane.xlu0 %1129
  %v1131 = vmul.f32 %v1127, %v49
  %v1132 = vmul.f32 %v1130, %v49
  %v1133 = vsub.f32 %v1123, %v1131
  %v1134 = vsub.f32 %v1124, %v1132
  %v1135 = vmul.f32 %v1133, %v1133
  %v1136 = vmul.f32 %v1134, %v1134
  %v1137 = vsel %vm36, %v1135, 0.0
  %1138 = vadd.xlane.f32.xlu0 %v1137
  %v1139 = vpop.xlane.xlu0 %1138
  %v1140 = vsel %vm36, %v1136, 0.0
  %1141 = vadd.xlane.f32.xlu0 %v1140
  %v1142 = vpop.xlane.xlu0 %1141
  %v1143 = vmul.f32 %v1139, %v49
  %v1144 = vmul.f32 %v1142, %v49
  %v1145 = vadd.f32 %v1143, 1e-12
  %v1146 = vadd.f32 %v1144, 1e-12
  %v1147 = vrsqrt.pop %v1145
  %v1148 = vmul.f32 %v1147, %v1145
  %v1149 = vmul.f32 %v1148, %v1147
  %v1150 = vmul.f32 0.5, %v1149
  %v1151 = vsub.f32 1.5, %v1150
  %v1152 = vmul.f32 %v1147, %v1151
  %vm1153 = vweird.f32 %v1145
  %vm1154 = vweird.f32 %v1147
  %vm1155 = vmor %vm1153, %vm1154
  %v1156 = vsel %vm1155, %v1147, %v1152
  %v1157 = vrsqrt.pop %v1146
  %v1158 = vmul.f32 %v1157, %v1146
  %v1159 = vmul.f32 %v1158, %v1157
  %v1160 = vmul.f32 0.5, %v1159
  %v1161 = vsub.f32 1.5, %v1160
  %v1162 = vmul.f32 %v1157, %v1161
  %vm1163 = vweird.f32 %v1146
  %vm1164 = vweird.f32 %v1157
  %vm1165 = vmor %vm1163, %vm1164
  %v1166 = vsel %vm1165, %v1157, %v1162
  %v1167 = vmul.f32 %v1133, %v1156
  %v1168 = vmul.f32 %v1134, %v1166
  %v1169 = vperm.slane %v638, 6
  %v1170 = vmul.f32 %v1167, %v1169
  %v1171 = vmul.f32 %v1168, %v1169
  %v1172 = vperm.slane %v638, 7
  %v1173 = vadd.f32 %v1170, %v1172
  %v1174 = vadd.f32 %v1171, %v1172
  %v1175 = vld [vmem:[%s3] sm:$0xff]
  %v1176 = vld [vmem:[%s3 + $0x8] sm:$0xff]
  %v1177 = vld [vmem:[%s3 + $0x10] sm:$0xff]
  %v1178 = vld [vmem:[%s3 + $0x18] sm:$0xff]
  %v1179 = vld [vmem:[%s2 + $0x2] sm:$0x1]
  %v1180 = vperm.slane %v1179, 0
  %v1182 = vsel %vm36, %v1173, 0
  %v1185 = vsel %vm36, %v1174, 0
  %1187 = vmatpush.msra.mxu0 0.0
  %1188 = vmatpush.msra.mxu0 0.0
  %1189 = vmatpush.msra.mxu0 0.0
  %1190 = vmatpush.msra.mxu0 0.0
  %1191 = vmatpush.msra.mxu0 0.0
  %1192 = vmatpush.msra.mxu0 0.0
  %1193 = vmatpush.msra.mxu0 0.0
  %1194 = vmatpush.msra.mxu0 0.0
  %1195 = vmatpush.msra.mxu0 0.0
  %1196 = vmatpush.msra.mxu0 0.0
  %1197 = vmatpush.msra.mxu0 0.0
  %1198 = vmatpush.msra.mxu0 0.0
  %1199 = vmatpush.msra.mxu0 %v1178
  %1200 = vmatpush.msra.mxu0 %v1177
  %1201 = vmatpush.msra.mxu0 %v1176
  %1202 = vmatpush.msra.mxu0 %v1175
  %1203 = vmatmul.f32.gmra.mxu0 %v1182
  %v1204 = vpop.f32.mrf.mxu0
  %v1205 = vadd.f32 %v1180, %v1204
  %1206 = vmatmul.f32.gmra.mxu0 %v1185
  %v1207 = vpop.f32.mrf.mxu0
  %v1208 = vadd.f32 %v1180, %v1207
  %1209 = vdwg.mxu0
  %v1210 = vtanh.pop %v1205
  %v1211 = vtanh.pop %v1208
  %1214 = vrot.lane.b32.xlu0 %v1210, 32
  %v1215 = vpop.permute.xlu0 %1214
  %1216 = vrot.lane.b32.xlu0 %v1211, 32
  %v1217 = vpop.permute.xlu0 %1216
  %v1220 = vsel %vm36, %v1173, %v1215
  %v1221 = vsel %vm36, %v1174, %v1217
  %vm1222 = vcmask 523264
  %v1223 = vsel %vm1222, %v1220, 0.0
  %v1224 = vsel %vm1222, %v1221, 0.0
  %1225 = vst [vmem:[%s9] sm:$0xff] %v1223
  %1226 = vst [vmem:[%s9 + $0x8] sm:$0xff] %v1224
  // Predicated region
  $region38: #{bert_encoder_forward.1} parent=0 // pred_check
    _
  $region39: #{bert_encoder_forward.1} parent=0 // pred_check_branch
    %1228 = sbr.rel (0) target = $region41
  $region40: #{bert_encoder_forward.1} parent=0 // pred_region
    _
  $region41: #{bert_encoder_forward.1} parent=0 // pred_fallthru
    _
  // Predicated region
  $region42: #{bert_encoder_forward.1} parent=0 // pred_check
    _
  $region43: #{bert_encoder_forward.1} parent=0 // pred_check_branch
    %1230 = sbr.rel (0) target = $region45
  $region44: #{bert_encoder_forward.1} parent=0 // pred_region
    _
  $region45: #{bert_encoder_forward.1} parent=0 // pred_fallthru
    _

</llo_original>
